<compile_context>
chip_gen: v6e
topology: v6e:2x2x1
jax: 0.10.0
libtpu: 0.0.40
codegen_flags: <defaults>
</compile_context>

<pallas_src>
import functools

import jax
import jax.numpy as jnp
from jax import lax
from jax.experimental import pallas as pl
from jax.experimental.pallas import tpu as pltpu

KSIZE = 7
PAD = KSIZE // 2
NACC = 4  # independent accumulators for the 49-tap loop


def _spatial_attention_kernel(w_ref, x_ref, o_ref, vpad_ref, *, C, H, W):
    # w_ref   : SMEM f32[49]              pre-summed conv weights (in-ch0 + in-ch1), (kh, kw) row-major
    # x_ref   : VMEM [1, C, H, W]          input block (W on the lane axis)
    # o_ref   : VMEM [1, C, H, W]          output block
    # vpad_ref: VMEM f32[7, H+2*PAD, W]    scratch: per-kw-offset, vertically zero-padded pooled maps
    f32 = jnp.float32

    # ---- Channel-wise max pooling (both pooled channels of the reference are max).
    # Streaming maximum over channels: only two (H, W) slabs live at a time.
    m = x_ref[0, 0].astype(f32)
    for c in range(1, C):
        m = jnp.maximum(m, x_ref[0, c].astype(f32))           # (H, W)

    # ---- Build the 7 horizontally pre-shifted, vertically zero-padded planes.
    #   vpad[dw, PAD + h, w] = pooled[h, w + (dw - PAD)]   (0 outside the image)
    # Zero only the PAD top/bottom rows of every plane (interior overwritten below).
    vpad_ref[:, 0:PAD, :] = jnp.zeros((KSIZE, PAD, W), f32)
    vpad_ref[:, PAD + H:, :] = jnp.zeros((KSIZE, PAD, W), f32)
    for dw in range(KSIZE):
        sw = dw - PAD
        lo = min(max(0, -sw), W)               # first valid destination column
        hi = max(min(W, W - sw), lo)           # one past last valid destination column
        if lo > 0:                             # zero left edge columns
            vpad_ref[dw, PAD:PAD + H, 0:lo] = jnp.zeros((H, lo), f32)
        if hi < W:                             # zero right edge columns
            vpad_ref[dw, PAD:PAD + H, hi:W] = jnp.zeros((H, W - hi), f32)
        if hi > lo:                            # lane-aligned interior store
            vpad_ref[dw, PAD:PAD + H, lo:hi] = m[:, lo + sw:hi + sw]

    # ---- 49-tap 7x7 conv: every tap is a lane-aligned static slice + multiply-add.
    #   out[h, w] += weight[dh, dw] * vpad[dw, h + dh, w]
    # 4 independent accumulators break the dependent-add chain (fills VALU slots).
    accs = [jnp.zeros((H, W), f32) for _ in range(NACC)]
    for dh in range(KSIZE):
        row_base = dh * KSIZE
        for dw in range(KSIZE):
            tap = row_base + dw
            wv = w_ref[tap]                                     # SMEM scalar
            accs[tap % NACC] = accs[tap % NACC] + wv * vpad_ref[dw, dh:dh + H, :]
    acc = (accs[0] + accs[1]) + (accs[2] + accs[3])             # (H, W) f32

    attn = jax.nn.sigmoid(acc)                                  # (H, W) f32

    # ---- Broadcast multiply, streaming one channel at a time (re-read from the ref).
    for c in range(C):
        o_ref[0, c] = (attn * x_ref[0, c].astype(f32)).astype(o_ref.dtype)


def spatial_attention(x, weight):
    """x: [B, C, H, W]; weight: [1, 2, 7, 7] (nn.Conv2d(2, 1, 7, padding=3, bias=False))."""
    B, C, H, W = x.shape

    # Both pooled channels are identical, so the 2-in-channel conv collapses to a
    # single-channel conv with the per-tap sum of the two input-channel weights.
    w_sum = (weight[0, 0] + weight[0, 1]).astype(jnp.float32).reshape(KSIZE * KSIZE)

    kernel = functools.partial(_spatial_attention_kernel, C=C, H=H, W=W)

    # Explicit VMEM budget: in + out blocks are double-buffered + the padded scratch.
    elem = jnp.dtype(x.dtype).itemsize
    block_bytes = C * H * W * elem
    scratch_bytes = KSIZE * (H + 2 * PAD) * W * 4
    vmem_limit = int(min(max(4 * block_bytes + scratch_bytes + (1 << 20),
                             4 * 1024 * 1024),
                         100 * 1024 * 1024))

    out = pl.pallas_call(
        kernel,
        out_shape=jax.ShapeDtypeStruct((B, C, H, W), x.dtype),
        grid_spec=pltpu.PrefetchScalarGridSpec(
            num_scalar_prefetch=0,
            grid=(B,),
            in_specs=[
                pl.BlockSpec(memory_space=pltpu.MemorySpace.SMEM),        # summed conv weights
                pl.BlockSpec((1, C, H, W), lambda b: (b, 0, 0, 0)),       # x block (W on lanes)
            ],
            out_specs=pl.BlockSpec((1, C, H, W), lambda b: (b, 0, 0, 0)),
            scratch_shapes=[pltpu.VMEM((KSIZE, H + 2 * PAD, W), jnp.float32)],
        ),
        compiler_params=pltpu.CompilerParams(
            dimension_semantics=("parallel",),
            vmem_limit_bytes=vmem_limit),
    )(w_sum, x)

    return out


def _reference(x, weight):
    # Pure-JAX reference mirroring the PyTorch forward exactly.
    m = jnp.max(x, axis=1, keepdims=True)             # "max" branch
    m2 = jnp.max(x, axis=1, keepdims=True)            # "mean" branch (also max!)
    pool = jnp.concatenate([m, m2], axis=1)           # (B, 2, H, W)
    conv = lax.conv_general_dilated(
        pool, weight, window_strides=(1, 1), padding=((PAD, PAD), (PAD, PAD)),
        dimension_numbers=("NCHW", "OIHW", "NCHW"))
    return jax.nn.sigmoid(conv) * x


if __name__ == "__main__":
    key = jax.random.PRNGKey(0)
    kx, kw = jax.random.split(key)

    B, C, H, W = 2, 4, 16, 16
    x = jax.random.normal(kx, (B, C, H, W), dtype=jnp.float32)
    # Deterministic synthetic conv weight, shape matches nn.Conv2d(2, 1, 7, bias=False)
    weight = 0.1 * jax.random.normal(kw, (1, 2, KSIZE, KSIZE), dtype=jnp.float32)

    out = jax.block_until_ready(spatial_attention(x, weight))

    ref = _reference(x, weight)
    assert out.shape == (B, C, H, W)
    assert jnp.allclose(out, ref, atol=1e-5, rtol=1e-5), "mismatch vs reference"

    print("KERNEL_OK")
</pallas_src>

<mosaic_0001>
module attributes {stable_mosaic.version = 11 : i64} {
  func.func @_spatial_attention_kernel(%arg0: i32, %arg1: memref<49xf32, #tpu.memory_space<smem>>, %arg2: memref<1x4x16x16xf32, #tpu.memory_space<vmem>>, %arg3: memref<1x4x16x16xf32, #tpu.memory_space<vmem>>, %arg4: memref<7x22x16xf32, #tpu.memory_space<vmem>>) attributes {dimension_semantics = [#tpu.dimension_semantics<parallel>], iteration_bounds = array<i64: 2>, scalar_prefetch = 0 : i64, scratch_operands = 1 : i64, tpu.core_type = #tpu.core_type<tc>, window_params = [{transform_indices = @transform_0, window_bounds = array<i64: 49>}, {transform_indices = @transform_1, window_bounds = array<i64: 1, 4, 16, 16>}, {transform_indices = @transform_2, window_bounds = array<i64: 1, 4, 16, 16>}]} {
    %c0 = arith.constant 0 : index
    %c0_0 = arith.constant 0 : index
    %c0_1 = arith.constant 0 : index
    %c0_2 = arith.constant 0 : index
    %0 = vector.load %arg2[%c0, %c0_0, %c0_1, %c0_2] : memref<1x4x16x16xf32, #tpu.memory_space<vmem>>, vector<1x1x16x16xf32>
    %1 = vector.shape_cast %0 : vector<1x1x16x16xf32> to vector<16x16xf32>
    %c0_3 = arith.constant 0 : index
    %c1 = arith.constant 1 : index
    %c0_4 = arith.constant 0 : index
    %c0_5 = arith.constant 0 : index
    %2 = vector.load %arg2[%c0_3, %c1, %c0_4, %c0_5] : memref<1x4x16x16xf32, #tpu.memory_space<vmem>>, vector<1x1x16x16xf32>
    %3 = vector.shape_cast %2 : vector<1x1x16x16xf32> to vector<16x16xf32>
    %4 = arith.maximumf %1, %3 : vector<16x16xf32>
    %c0_6 = arith.constant 0 : index
    %c2 = arith.constant 2 : index
    %c0_7 = arith.constant 0 : index
    %c0_8 = arith.constant 0 : index
    %5 = vector.load %arg2[%c0_6, %c2, %c0_7, %c0_8] : memref<1x4x16x16xf32, #tpu.memory_space<vmem>>, vector<1x1x16x16xf32>
    %6 = vector.shape_cast %5 : vector<1x1x16x16xf32> to vector<16x16xf32>
    %7 = arith.maximumf %4, %6 : vector<16x16xf32>
    %c0_9 = arith.constant 0 : index
    %c3 = arith.constant 3 : index
    %c0_10 = arith.constant 0 : index
    %c0_11 = arith.constant 0 : index
    %8 = vector.load %arg2[%c0_9, %c3, %c0_10, %c0_11] : memref<1x4x16x16xf32, #tpu.memory_space<vmem>>, vector<1x1x16x16xf32>
    %9 = vector.shape_cast %8 : vector<1x1x16x16xf32> to vector<16x16xf32>
    %10 = arith.maximumf %7, %9 : vector<16x16xf32>
    %cst = arith.constant 0.000000e+00 : f32
    %11 = vector.broadcast %cst : f32 to vector<7x3x16xf32>
    %c0_12 = arith.constant 0 : index
    %c0_13 = arith.constant 0 : index
    %c0_14 = arith.constant 0 : index
    %12 = vector.load %arg4[%c0_12, %c0_13, %c0_14] : memref<7x22x16xf32, #tpu.memory_space<vmem>>, vector<7x3x16xf32>
    tpu.vector_store %arg4[%c0_12, %c0_13, %c0_14], %11 {strides = array<i32>} : memref<7x22x16xf32, #tpu.memory_space<vmem>>, vector<7x3x16xf32>,
    %cst_15 = arith.constant 0.000000e+00 : f32
    %13 = vector.broadcast %cst_15 : f32 to vector<7x3x16xf32>
    %c0_16 = arith.constant 0 : index
    %c19 = arith.constant 19 : index
    %c0_17 = arith.constant 0 : index
    %14 = vector.load %arg4[%c0_16, %c19, %c0_17] : memref<7x22x16xf32, #tpu.memory_space<vmem>>, vector<7x3x16xf32>
    tpu.vector_store %arg4[%c0_16, %c19, %c0_17], %13 {strides = array<i32>} : memref<7x22x16xf32, #tpu.memory_space<vmem>>, vector<7x3x16xf32>,
    %cst_18 = arith.constant 0.000000e+00 : f32
    %15 = vector.broadcast %cst_18 : f32 to vector<16x3xf32>
    %c0_19 = arith.constant 0 : index
    %c3_20 = arith.constant 3 : index
    %c0_21 = arith.constant 0 : index
    %16 = vector.load %arg4[%c0_19, %c3_20, %c0_21] : memref<7x22x16xf32, #tpu.memory_space<vmem>>, vector<1x16x3xf32>
    %17 = vector.shape_cast %16 : vector<1x16x3xf32> to vector<16x3xf32>
    %18 = vector.shape_cast %15 : vector<16x3xf32> to vector<1x16x3xf32>
    tpu.vector_store %arg4[%c0_19, %c3_20, %c0_21], %18 {strides = array<i32>} : memref<7x22x16xf32, #tpu.memory_space<vmem>>, vector<1x16x3xf32>,
    %19 = vector.extract_strided_slice %10 {offsets = [0, 0], sizes = [16, 13], strides = [1, 1]} : vector<16x16xf32> to vector<16x13xf32>
    %c0_22 = arith.constant 0 : index
    %c3_23 = arith.constant 3 : index
    %c3_24 = arith.constant 3 : index
    %20 = vector.load %arg4[%c0_22, %c3_23, %c3_24] : memref<7x22x16xf32, #tpu.memory_space<vmem>>, vector<1x16x13xf32>
    %21 = vector.shape_cast %20 : vector<1x16x13xf32> to vector<16x13xf32>
    %22 = vector.shape_cast %19 : vector<16x13xf32> to vector<1x16x13xf32>
    tpu.vector_store %arg4[%c0_22, %c3_23, %c3_24], %22 {strides = array<i32>} : memref<7x22x16xf32, #tpu.memory_space<vmem>>, vector<1x16x13xf32>,
    %cst_25 = arith.constant 0.000000e+00 : f32
    %23 = vector.broadcast %cst_25 : f32 to vector<16x2xf32>
    %c1_26 = arith.constant 1 : index
    %c3_27 = arith.constant 3 : index
    %c0_28 = arith.constant 0 : index
    %24 = vector.load %arg4[%c1_26, %c3_27, %c0_28] : memref<7x22x16xf32, #tpu.memory_space<vmem>>, vector<1x16x2xf32>
    %25 = vector.shape_cast %24 : vector<1x16x2xf32> to vector<16x2xf32>
    %26 = vector.shape_cast %23 : vector<16x2xf32> to vector<1x16x2xf32>
    tpu.vector_store %arg4[%c1_26, %c3_27, %c0_28], %26 {strides = array<i32>} : memref<7x22x16xf32, #tpu.memory_space<vmem>>, vector<1x16x2xf32>,
    %27 = vector.extract_strided_slice %10 {offsets = [0, 0], sizes = [16, 14], strides = [1, 1]} : vector<16x16xf32> to vector<16x14xf32>
    %c1_29 = arith.constant 1 : index
    %c3_30 = arith.constant 3 : index
    %c2_31 = arith.constant 2 : index
    %28 = vector.load %arg4[%c1_29, %c3_30, %c2_31] : memref<7x22x16xf32, #tpu.memory_space<vmem>>, vector<1x16x14xf32>
    %29 = vector.shape_cast %28 : vector<1x16x14xf32> to vector<16x14xf32>
    %30 = vector.shape_cast %27 : vector<16x14xf32> to vector<1x16x14xf32>
    tpu.vector_store %arg4[%c1_29, %c3_30, %c2_31], %30 {strides = array<i32>} : memref<7x22x16xf32, #tpu.memory_space<vmem>>, vector<1x16x14xf32>,
    %cst_32 = arith.constant 0.000000e+00 : f32
    %31 = vector.broadcast %cst_32 : f32 to vector<16x1xf32>
    %c2_33 = arith.constant 2 : index
    %c3_34 = arith.constant 3 : index
    %c0_35 = arith.constant 0 : index
    %32 = vector.load %arg4[%c2_33, %c3_34, %c0_35] : memref<7x22x16xf32, #tpu.memory_space<vmem>>, vector<1x16x1xf32>
    %33 = vector.shape_cast %32 : vector<1x16x1xf32> to vector<16x1xf32>
    %34 = vector.shape_cast %31 : vector<16x1xf32> to vector<1x16x1xf32>
    tpu.vector_store %arg4[%c2_33, %c3_34, %c0_35], %34 {strides = array<i32>} : memref<7x22x16xf32, #tpu.memory_space<vmem>>, vector<1x16x1xf32>,
    %35 = vector.extract_strided_slice %10 {offsets = [0, 0], sizes = [16, 15], strides = [1, 1]} : vector<16x16xf32> to vector<16x15xf32>
    %c2_36 = arith.constant 2 : index
    %c3_37 = arith.constant 3 : index
    %c1_38 = arith.constant 1 : index
    %36 = vector.load %arg4[%c2_36, %c3_37, %c1_38] : memref<7x22x16xf32, #tpu.memory_space<vmem>>, vector<1x16x15xf32>
    %37 = vector.shape_cast %36 : vector<1x16x15xf32> to vector<16x15xf32>
    %38 = vector.shape_cast %35 : vector<16x15xf32> to vector<1x16x15xf32>
    tpu.vector_store %arg4[%c2_36, %c3_37, %c1_38], %38 {strides = array<i32>} : memref<7x22x16xf32, #tpu.memory_space<vmem>>, vector<1x16x15xf32>,
    %c3_39 = arith.constant 3 : index
    %c3_40 = arith.constant 3 : index
    %c0_41 = arith.constant 0 : index
    %39 = vector.load %arg4[%c3_39, %c3_40, %c0_41] : memref<7x22x16xf32, #tpu.memory_space<vmem>>, vector<1x16x16xf32>
    %40 = vector.shape_cast %39 : vector<1x16x16xf32> to vector<16x16xf32>
    %41 = vector.shape_cast %10 : vector<16x16xf32> to vector<1x16x16xf32>
    tpu.vector_store %arg4[%c3_39, %c3_40, %c0_41], %41 {strides = array<i32>} : memref<7x22x16xf32, #tpu.memory_space<vmem>>, vector<1x16x16xf32>,
    %cst_42 = arith.constant 0.000000e+00 : f32
    %42 = vector.broadcast %cst_42 : f32 to vector<16x1xf32>
    %c4 = arith.constant 4 : index
    %c3_43 = arith.constant 3 : index
    %c15 = arith.constant 15 : index
    %43 = vector.load %arg4[%c4, %c3_43, %c15] : memref<7x22x16xf32, #tpu.memory_space<vmem>>, vector<1x16x1xf32>
    %44 = vector.shape_cast %43 : vector<1x16x1xf32> to vector<16x1xf32>
    %45 = vector.shape_cast %42 : vector<16x1xf32> to vector<1x16x1xf32>
    tpu.vector_store %arg4[%c4, %c3_43, %c15], %45 {strides = array<i32>} : memref<7x22x16xf32, #tpu.memory_space<vmem>>, vector<1x16x1xf32>,
    %46 = vector.extract_strided_slice %10 {offsets = [0, 1], sizes = [16, 15], strides = [1, 1]} : vector<16x16xf32> to vector<16x15xf32>
    %c4_44 = arith.constant 4 : index
    %c3_45 = arith.constant 3 : index
    %c0_46 = arith.constant 0 : index
    %47 = vector.load %arg4[%c4_44, %c3_45, %c0_46] : memref<7x22x16xf32, #tpu.memory_space<vmem>>, vector<1x16x15xf32>
    %48 = vector.shape_cast %47 : vector<1x16x15xf32> to vector<16x15xf32>
    %49 = vector.shape_cast %46 : vector<16x15xf32> to vector<1x16x15xf32>
    tpu.vector_store %arg4[%c4_44, %c3_45, %c0_46], %49 {strides = array<i32>} : memref<7x22x16xf32, #tpu.memory_space<vmem>>, vector<1x16x15xf32>,
    %cst_47 = arith.constant 0.000000e+00 : f32
    %50 = vector.broadcast %cst_47 : f32 to vector<16x2xf32>
    %c5 = arith.constant 5 : index
    %c3_48 = arith.constant 3 : index
    %c14 = arith.constant 14 : index
    %51 = vector.load %arg4[%c5, %c3_48, %c14] : memref<7x22x16xf32, #tpu.memory_space<vmem>>, vector<1x16x2xf32>
    %52 = vector.shape_cast %51 : vector<1x16x2xf32> to vector<16x2xf32>
    %53 = vector.shape_cast %50 : vector<16x2xf32> to vector<1x16x2xf32>
    tpu.vector_store %arg4[%c5, %c3_48, %c14], %53 {strides = array<i32>} : memref<7x22x16xf32, #tpu.memory_space<vmem>>, vector<1x16x2xf32>,
    %54 = vector.extract_strided_slice %10 {offsets = [0, 2], sizes = [16, 14], strides = [1, 1]} : vector<16x16xf32> to vector<16x14xf32>
    %c5_49 = arith.constant 5 : index
    %c3_50 = arith.constant 3 : index
    %c0_51 = arith.constant 0 : index
    %55 = vector.load %arg4[%c5_49, %c3_50, %c0_51] : memref<7x22x16xf32, #tpu.memory_space<vmem>>, vector<1x16x14xf32>
    %56 = vector.shape_cast %55 : vector<1x16x14xf32> to vector<16x14xf32>
    %57 = vector.shape_cast %54 : vector<16x14xf32> to vector<1x16x14xf32>
    tpu.vector_store %arg4[%c5_49, %c3_50, %c0_51], %57 {strides = array<i32>} : memref<7x22x16xf32, #tpu.memory_space<vmem>>, vector<1x16x14xf32>,
    %cst_52 = arith.constant 0.000000e+00 : f32
    %58 = vector.broadcast %cst_52 : f32 to vector<16x3xf32>
    %c6 = arith.constant 6 : index
    %c3_53 = arith.constant 3 : index
    %c13 = arith.constant 13 : index
    %59 = vector.load %arg4[%c6, %c3_53, %c13] : memref<7x22x16xf32, #tpu.memory_space<vmem>>, vector<1x16x3xf32>
    %60 = vector.shape_cast %59 : vector<1x16x3xf32> to vector<16x3xf32>
    %61 = vector.shape_cast %58 : vector<16x3xf32> to vector<1x16x3xf32>
    tpu.vector_store %arg4[%c6, %c3_53, %c13], %61 {strides = array<i32>} : memref<7x22x16xf32, #tpu.memory_space<vmem>>, vector<1x16x3xf32>,
    %62 = vector.extract_strided_slice %10 {offsets = [0, 3], sizes = [16, 13], strides = [1, 1]} : vector<16x16xf32> to vector<16x13xf32>
    %c6_54 = arith.constant 6 : index
    %c3_55 = arith.constant 3 : index
    %c0_56 = arith.constant 0 : index
    %63 = vector.load %arg4[%c6_54, %c3_55, %c0_56] : memref<7x22x16xf32, #tpu.memory_space<vmem>>, vector<1x16x13xf32>
    %64 = vector.shape_cast %63 : vector<1x16x13xf32> to vector<16x13xf32>
    %65 = vector.shape_cast %62 : vector<16x13xf32> to vector<1x16x13xf32>
    tpu.vector_store %arg4[%c6_54, %c3_55, %c0_56], %65 {strides = array<i32>} : memref<7x22x16xf32, #tpu.memory_space<vmem>>, vector<1x16x13xf32>,
    %cst_57 = arith.constant 0.000000e+00 : f32
    %66 = vector.broadcast %cst_57 : f32 to vector<16x16xf32>
    %cst_58 = arith.constant 0.000000e+00 : f32
    %67 = vector.broadcast %cst_58 : f32 to vector<16x16xf32>
    %cst_59 = arith.constant 0.000000e+00 : f32
    %68 = vector.broadcast %cst_59 : f32 to vector<16x16xf32>
    %cst_60 = arith.constant 0.000000e+00 : f32
    %69 = vector.broadcast %cst_60 : f32 to vector<16x16xf32>
    %c0_61 = arith.constant 0 : index
    %70 = memref.load %arg1[%c0_61] : memref<49xf32, #tpu.memory_space<smem>>
    %c0_62 = arith.constant 0 : index
    %c0_63 = arith.constant 0 : index
    %c0_64 = arith.constant 0 : index
    %71 = vector.load %arg4[%c0_62, %c0_63, %c0_64] : memref<7x22x16xf32, #tpu.memory_space<vmem>>, vector<1x16x16xf32>
    %72 = vector.shape_cast %71 : vector<1x16x16xf32> to vector<16x16xf32>
    %73 = vector.broadcast %70 : f32 to vector<16x16xf32>
    %74 = arith.mulf %73, %72 : vector<16x16xf32>
    %75 = arith.addf %66, %74 : vector<16x16xf32>
    %c1_65 = arith.constant 1 : index
    %76 = memref.load %arg1[%c1_65] : memref<49xf32, #tpu.memory_space<smem>>
    %c1_66 = arith.constant 1 : index
    %c0_67 = arith.constant 0 : index
    %c0_68 = arith.constant 0 : index
    %77 = vector.load %arg4[%c1_66, %c0_67, %c0_68] : memref<7x22x16xf32, #tpu.memory_space<vmem>>, vector<1x16x16xf32>
    %78 = vector.shape_cast %77 : vector<1x16x16xf32> to vector<16x16xf32>
    %79 = vector.broadcast %76 : f32 to vector<16x16xf32>
    %80 = arith.mulf %79, %78 : vector<16x16xf32>
    %81 = arith.addf %67, %80 : vector<16x16xf32>
    %c2_69 = arith.constant 2 : index
    %82 = memref.load %arg1[%c2_69] : memref<49xf32, #tpu.memory_space<smem>>
    %c2_70 = arith.constant 2 : index
    %c0_71 = arith.constant 0 : index
    %c0_72 = arith.constant 0 : index
    %83 = vector.load %arg4[%c2_70, %c0_71, %c0_72] : memref<7x22x16xf32, #tpu.memory_space<vmem>>, vector<1x16x16xf32>
    %84 = vector.shape_cast %83 : vector<1x16x16xf32> to vector<16x16xf32>
    %85 = vector.broadcast %82 : f32 to vector<16x16xf32>
    %86 = arith.mulf %85, %84 : vector<16x16xf32>
    %87 = arith.addf %68, %86 : vector<16x16xf32>
    %c3_73 = arith.constant 3 : index
    %88 = memref.load %arg1[%c3_73] : memref<49xf32, #tpu.memory_space<smem>>
    %c3_74 = arith.constant 3 : index
    %c0_75 = arith.constant 0 : index
    %c0_76 = arith.constant 0 : index
    %89 = vector.load %arg4[%c3_74, %c0_75, %c0_76] : memref<7x22x16xf32, #tpu.memory_space<vmem>>, vector<1x16x16xf32>
    %90 = vector.shape_cast %89 : vector<1x16x16xf32> to vector<16x16xf32>
    %91 = vector.broadcast %88 : f32 to vector<16x16xf32>
    %92 = arith.mulf %91, %90 : vector<16x16xf32>
    %93 = arith.addf %69, %92 : vector<16x16xf32>
    %c4_77 = arith.constant 4 : index
    %94 = memref.load %arg1[%c4_77] : memref<49xf32, #tpu.memory_space<smem>>
    %c4_78 = arith.constant 4 : index
    %c0_79 = arith.constant 0 : index
    %c0_80 = arith.constant 0 : index
    %95 = vector.load %arg4[%c4_78, %c0_79, %c0_80] : memref<7x22x16xf32, #tpu.memory_space<vmem>>, vector<1x16x16xf32>
    %96 = vector.shape_cast %95 : vector<1x16x16xf32> to vector<16x16xf32>
    %97 = vector.broadcast %94 : f32 to vector<16x16xf32>
    %98 = arith.mulf %97, %96 : vector<16x16xf32>
    %99 = arith.addf %75, %98 : vector<16x16xf32>
    %c5_81 = arith.constant 5 : index
    %100 = memref.load %arg1[%c5_81] : memref<49xf32, #tpu.memory_space<smem>>
    %c5_82 = arith.constant 5 : index
    %c0_83 = arith.constant 0 : index
    %c0_84 = arith.constant 0 : index
    %101 = vector.load %arg4[%c5_82, %c0_83, %c0_84] : memref<7x22x16xf32, #tpu.memory_space<vmem>>, vector<1x16x16xf32>
    %102 = vector.shape_cast %101 : vector<1x16x16xf32> to vector<16x16xf32>
    %103 = vector.broadcast %100 : f32 to vector<16x16xf32>
    %104 = arith.mulf %103, %102 : vector<16x16xf32>
    %105 = arith.addf %81, %104 : vector<16x16xf32>
    %c6_85 = arith.constant 6 : index
    %106 = memref.load %arg1[%c6_85] : memref<49xf32, #tpu.memory_space<smem>>
    %c6_86 = arith.constant 6 : index
    %c0_87 = arith.constant 0 : index
    %c0_88 = arith.constant 0 : index
    %107 = vector.load %arg4[%c6_86, %c0_87, %c0_88] : memref<7x22x16xf32, #tpu.memory_space<vmem>>, vector<1x16x16xf32>
    %108 = vector.shape_cast %107 : vector<1x16x16xf32> to vector<16x16xf32>
    %109 = vector.broadcast %106 : f32 to vector<16x16xf32>
    %110 = arith.mulf %109, %108 : vector<16x16xf32>
    %111 = arith.addf %87, %110 : vector<16x16xf32>
    %c7 = arith.constant 7 : index
    %112 = memref.load %arg1[%c7] : memref<49xf32, #tpu.memory_space<smem>>
    %c0_89 = arith.constant 0 : index
    %c1_90 = arith.constant 1 : index
    %c0_91 = arith.constant 0 : index
    %113 = vector.load %arg4[%c0_89, %c1_90, %c0_91] : memref<7x22x16xf32, #tpu.memory_space<vmem>>, vector<1x16x16xf32>
    %114 = vector.shape_cast %113 : vector<1x16x16xf32> to vector<16x16xf32>
    %115 = vector.broadcast %112 : f32 to vector<16x16xf32>
    %116 = arith.mulf %115, %114 : vector<16x16xf32>
    %117 = arith.addf %93, %116 : vector<16x16xf32>
    %c8 = arith.constant 8 : index
    %118 = memref.load %arg1[%c8] : memref<49xf32, #tpu.memory_space<smem>>
    %c1_92 = arith.constant 1 : index
    %c1_93 = arith.constant 1 : index
    %c0_94 = arith.constant 0 : index
    %119 = vector.load %arg4[%c1_92, %c1_93, %c0_94] : memref<7x22x16xf32, #tpu.memory_space<vmem>>, vector<1x16x16xf32>
    %120 = vector.shape_cast %119 : vector<1x16x16xf32> to vector<16x16xf32>
    %121 = vector.broadcast %118 : f32 to vector<16x16xf32>
    %122 = arith.mulf %121, %120 : vector<16x16xf32>
    %123 = arith.addf %99, %122 : vector<16x16xf32>
    %c9 = arith.constant 9 : index
    %124 = memref.load %arg1[%c9] : memref<49xf32, #tpu.memory_space<smem>>
    %c2_95 = arith.constant 2 : index
    %c1_96 = arith.constant 1 : index
    %c0_97 = arith.constant 0 : index
    %125 = vector.load %arg4[%c2_95, %c1_96, %c0_97] : memref<7x22x16xf32, #tpu.memory_space<vmem>>, vector<1x16x16xf32>
    %126 = vector.shape_cast %125 : vector<1x16x16xf32> to vector<16x16xf32>
    %127 = vector.broadcast %124 : f32 to vector<16x16xf32>
    %128 = arith.mulf %127, %126 : vector<16x16xf32>
    %129 = arith.addf %105, %128 : vector<16x16xf32>
    %c10 = arith.constant 10 : index
    %130 = memref.load %arg1[%c10] : memref<49xf32, #tpu.memory_space<smem>>
    %c3_98 = arith.constant 3 : index
    %c1_99 = arith.constant 1 : index
    %c0_100 = arith.constant 0 : index
    %131 = vector.load %arg4[%c3_98, %c1_99, %c0_100] : memref<7x22x16xf32, #tpu.memory_space<vmem>>, vector<1x16x16xf32>
    %132 = vector.shape_cast %131 : vector<1x16x16xf32> to vector<16x16xf32>
    %133 = vector.broadcast %130 : f32 to vector<16x16xf32>
    %134 = arith.mulf %133, %132 : vector<16x16xf32>
    %135 = arith.addf %111, %134 : vector<16x16xf32>
    %c11 = arith.constant 11 : index
    %136 = memref.load %arg1[%c11] : memref<49xf32, #tpu.memory_space<smem>>
    %c4_101 = arith.constant 4 : index
    %c1_102 = arith.constant 1 : index
    %c0_103 = arith.constant 0 : index
    %137 = vector.load %arg4[%c4_101, %c1_102, %c0_103] : memref<7x22x16xf32, #tpu.memory_space<vmem>>, vector<1x16x16xf32>
    %138 = vector.shape_cast %137 : vector<1x16x16xf32> to vector<16x16xf32>
    %139 = vector.broadcast %136 : f32 to vector<16x16xf32>
    %140 = arith.mulf %139, %138 : vector<16x16xf32>
    %141 = arith.addf %117, %140 : vector<16x16xf32>
    %c12 = arith.constant 12 : index
    %142 = memref.load %arg1[%c12] : memref<49xf32, #tpu.memory_space<smem>>
    %c5_104 = arith.constant 5 : index
    %c1_105 = arith.constant 1 : index
    %c0_106 = arith.constant 0 : index
    %143 = vector.load %arg4[%c5_104, %c1_105, %c0_106] : memref<7x22x16xf32, #tpu.memory_space<vmem>>, vector<1x16x16xf32>
    %144 = vector.shape_cast %143 : vector<1x16x16xf32> to vector<16x16xf32>
    %145 = vector.broadcast %142 : f32 to vector<16x16xf32>
    %146 = arith.mulf %145, %144 : vector<16x16xf32>
    %147 = arith.addf %123, %146 : vector<16x16xf32>
    %c13_107 = arith.constant 13 : index
    %148 = memref.load %arg1[%c13_107] : memref<49xf32, #tpu.memory_space<smem>>
    %c6_108 = arith.constant 6 : index
    %c1_109 = arith.constant 1 : index
    %c0_110 = arith.constant 0 : index
    %149 = vector.load %arg4[%c6_108, %c1_109, %c0_110] : memref<7x22x16xf32, #tpu.memory_space<vmem>>, vector<1x16x16xf32>
    %150 = vector.shape_cast %149 : vector<1x16x16xf32> to vector<16x16xf32>
    %151 = vector.broadcast %148 : f32 to vector<16x16xf32>
    %152 = arith.mulf %151, %150 : vector<16x16xf32>
    %153 = arith.addf %129, %152 : vector<16x16xf32>
    %c14_111 = arith.constant 14 : index
    %154 = memref.load %arg1[%c14_111] : memref<49xf32, #tpu.memory_space<smem>>
    %c0_112 = arith.constant 0 : index
    %c2_113 = arith.constant 2 : index
    %c0_114 = arith.constant 0 : index
    %155 = vector.load %arg4[%c0_112, %c2_113, %c0_114] : memref<7x22x16xf32, #tpu.memory_space<vmem>>, vector<1x16x16xf32>
    %156 = vector.shape_cast %155 : vector<1x16x16xf32> to vector<16x16xf32>
    %157 = vector.broadcast %154 : f32 to vector<16x16xf32>
    %158 = arith.mulf %157, %156 : vector<16x16xf32>
    %159 = arith.addf %135, %158 : vector<16x16xf32>
    %c15_115 = arith.constant 15 : index
    %160 = memref.load %arg1[%c15_115] : memref<49xf32, #tpu.memory_space<smem>>
    %c1_116 = arith.constant 1 : index
    %c2_117 = arith.constant 2 : index
    %c0_118 = arith.constant 0 : index
    %161 = vector.load %arg4[%c1_116, %c2_117, %c0_118] : memref<7x22x16xf32, #tpu.memory_space<vmem>>, vector<1x16x16xf32>
    %162 = vector.shape_cast %161 : vector<1x16x16xf32> to vector<16x16xf32>
    %163 = vector.broadcast %160 : f32 to vector<16x16xf32>
    %164 = arith.mulf %163, %162 : vector<16x16xf32>
    %165 = arith.addf %141, %164 : vector<16x16xf32>
    %c16 = arith.constant 16 : index
    %166 = memref.load %arg1[%c16] : memref<49xf32, #tpu.memory_space<smem>>
    %c2_119 = arith.constant 2 : index
    %c2_120 = arith.constant 2 : index
    %c0_121 = arith.constant 0 : index
    %167 = vector.load %arg4[%c2_119, %c2_120, %c0_121] : memref<7x22x16xf32, #tpu.memory_space<vmem>>, vector<1x16x16xf32>
    %168 = vector.shape_cast %167 : vector<1x16x16xf32> to vector<16x16xf32>
    %169 = vector.broadcast %166 : f32 to vector<16x16xf32>
    %170 = arith.mulf %169, %168 : vector<16x16xf32>
    %171 = arith.addf %147, %170 : vector<16x16xf32>
    %c17 = arith.constant 17 : index
    %172 = memref.load %arg1[%c17] : memref<49xf32, #tpu.memory_space<smem>>
    %c3_122 = arith.constant 3 : index
    %c2_123 = arith.constant 2 : index
    %c0_124 = arith.constant 0 : index
    %173 = vector.load %arg4[%c3_122, %c2_123, %c0_124] : memref<7x22x16xf32, #tpu.memory_space<vmem>>, vector<1x16x16xf32>
    %174 = vector.shape_cast %173 : vector<1x16x16xf32> to vector<16x16xf32>
    %175 = vector.broadcast %172 : f32 to vector<16x16xf32>
    %176 = arith.mulf %175, %174 : vector<16x16xf32>
    %177 = arith.addf %153, %176 : vector<16x16xf32>
    %c18 = arith.constant 18 : index
    %178 = memref.load %arg1[%c18] : memref<49xf32, #tpu.memory_space<smem>>
    %c4_125 = arith.constant 4 : index
    %c2_126 = arith.constant 2 : index
    %c0_127 = arith.constant 0 : index
    %179 = vector.load %arg4[%c4_125, %c2_126, %c0_127] : memref<7x22x16xf32, #tpu.memory_space<vmem>>, vector<1x16x16xf32>
    %180 = vector.shape_cast %179 : vector<1x16x16xf32> to vector<16x16xf32>
    %181 = vector.broadcast %178 : f32 to vector<16x16xf32>
    %182 = arith.mulf %181, %180 : vector<16x16xf32>
    %183 = arith.addf %159, %182 : vector<16x16xf32>
    %c19_128 = arith.constant 19 : index
    %184 = memref.load %arg1[%c19_128] : memref<49xf32, #tpu.memory_space<smem>>
    %c5_129 = arith.constant 5 : index
    %c2_130 = arith.constant 2 : index
    %c0_131 = arith.constant 0 : index
    %185 = vector.load %arg4[%c5_129, %c2_130, %c0_131] : memref<7x22x16xf32, #tpu.memory_space<vmem>>, vector<1x16x16xf32>
    %186 = vector.shape_cast %185 : vector<1x16x16xf32> to vector<16x16xf32>
    %187 = vector.broadcast %184 : f32 to vector<16x16xf32>
    %188 = arith.mulf %187, %186 : vector<16x16xf32>
    %189 = arith.addf %165, %188 : vector<16x16xf32>
    %c20 = arith.constant 20 : index
    %190 = memref.load %arg1[%c20] : memref<49xf32, #tpu.memory_space<smem>>
    %c6_132 = arith.constant 6 : index
    %c2_133 = arith.constant 2 : index
    %c0_134 = arith.constant 0 : index
    %191 = vector.load %arg4[%c6_132, %c2_133, %c0_134] : memref<7x22x16xf32, #tpu.memory_space<vmem>>, vector<1x16x16xf32>
    %192 = vector.shape_cast %191 : vector<1x16x16xf32> to vector<16x16xf32>
    %193 = vector.broadcast %190 : f32 to vector<16x16xf32>
    %194 = arith.mulf %193, %192 : vector<16x16xf32>
    %195 = arith.addf %171, %194 : vector<16x16xf32>
    %c21 = arith.constant 21 : index
    %196 = memref.load %arg1[%c21] : memref<49xf32, #tpu.memory_space<smem>>
    %c0_135 = arith.constant 0 : index
    %c3_136 = arith.constant 3 : index
    %c0_137 = arith.constant 0 : index
    %197 = vector.load %arg4[%c0_135, %c3_136, %c0_137] : memref<7x22x16xf32, #tpu.memory_space<vmem>>, vector<1x16x16xf32>
    %198 = vector.shape_cast %197 : vector<1x16x16xf32> to vector<16x16xf32>
    %199 = vector.broadcast %196 : f32 to vector<16x16xf32>
    %200 = arith.mulf %199, %198 : vector<16x16xf32>
    %201 = arith.addf %177, %200 : vector<16x16xf32>
    %c22 = arith.constant 22 : index
    %202 = memref.load %arg1[%c22] : memref<49xf32, #tpu.memory_space<smem>>
    %c1_138 = arith.constant 1 : index
    %c3_139 = arith.constant 3 : index
    %c0_140 = arith.constant 0 : index
    %203 = vector.load %arg4[%c1_138, %c3_139, %c0_140] : memref<7x22x16xf32, #tpu.memory_space<vmem>>, vector<1x16x16xf32>
    %204 = vector.shape_cast %203 : vector<1x16x16xf32> to vector<16x16xf32>
    %205 = vector.broadcast %202 : f32 to vector<16x16xf32>
    %206 = arith.mulf %205, %204 : vector<16x16xf32>
    %207 = arith.addf %183, %206 : vector<16x16xf32>
    %c23 = arith.constant 23 : index
    %208 = memref.load %arg1[%c23] : memref<49xf32, #tpu.memory_space<smem>>
    %c2_141 = arith.constant 2 : index
    %c3_142 = arith.constant 3 : index
    %c0_143 = arith.constant 0 : index
    %209 = vector.load %arg4[%c2_141, %c3_142, %c0_143] : memref<7x22x16xf32, #tpu.memory_space<vmem>>, vector<1x16x16xf32>
    %210 = vector.shape_cast %209 : vector<1x16x16xf32> to vector<16x16xf32>
    %211 = vector.broadcast %208 : f32 to vector<16x16xf32>
    %212 = arith.mulf %211, %210 : vector<16x16xf32>
    %213 = arith.addf %189, %212 : vector<16x16xf32>
    %c24 = arith.constant 24 : index
    %214 = memref.load %arg1[%c24] : memref<49xf32, #tpu.memory_space<smem>>
    %c3_144 = arith.constant 3 : index
    %c3_145 = arith.constant 3 : index
    %c0_146 = arith.constant 0 : index
    %215 = vector.load %arg4[%c3_144, %c3_145, %c0_146] : memref<7x22x16xf32, #tpu.memory_space<vmem>>, vector<1x16x16xf32>
    %216 = vector.shape_cast %215 : vector<1x16x16xf32> to vector<16x16xf32>
    %217 = vector.broadcast %214 : f32 to vector<16x16xf32>
    %218 = arith.mulf %217, %216 : vector<16x16xf32>
    %219 = arith.addf %195, %218 : vector<16x16xf32>
    %c25 = arith.constant 25 : index
    %220 = memref.load %arg1[%c25] : memref<49xf32, #tpu.memory_space<smem>>
    %c4_147 = arith.constant 4 : index
    %c3_148 = arith.constant 3 : index
    %c0_149 = arith.constant 0 : index
    %221 = vector.load %arg4[%c4_147, %c3_148, %c0_149] : memref<7x22x16xf32, #tpu.memory_space<vmem>>, vector<1x16x16xf32>
    %222 = vector.shape_cast %221 : vector<1x16x16xf32> to vector<16x16xf32>
    %223 = vector.broadcast %220 : f32 to vector<16x16xf32>
    %224 = arith.mulf %223, %222 : vector<16x16xf32>
    %225 = arith.addf %201, %224 : vector<16x16xf32>
    %c26 = arith.constant 26 : index
    %226 = memref.load %arg1[%c26] : memref<49xf32, #tpu.memory_space<smem>>
    %c5_150 = arith.constant 5 : index
    %c3_151 = arith.constant 3 : index
    %c0_152 = arith.constant 0 : index
    %227 = vector.load %arg4[%c5_150, %c3_151, %c0_152] : memref<7x22x16xf32, #tpu.memory_space<vmem>>, vector<1x16x16xf32>
    %228 = vector.shape_cast %227 : vector<1x16x16xf32> to vector<16x16xf32>
    %229 = vector.broadcast %226 : f32 to vector<16x16xf32>
    %230 = arith.mulf %229, %228 : vector<16x16xf32>
    %231 = arith.addf %207, %230 : vector<16x16xf32>
    %c27 = arith.constant 27 : index
    %232 = memref.load %arg1[%c27] : memref<49xf32, #tpu.memory_space<smem>>
    %c6_153 = arith.constant 6 : index
    %c3_154 = arith.constant 3 : index
    %c0_155 = arith.constant 0 : index
    %233 = vector.load %arg4[%c6_153, %c3_154, %c0_155] : memref<7x22x16xf32, #tpu.memory_space<vmem>>, vector<1x16x16xf32>
    %234 = vector.shape_cast %233 : vector<1x16x16xf32> to vector<16x16xf32>
    %235 = vector.broadcast %232 : f32 to vector<16x16xf32>
    %236 = arith.mulf %235, %234 : vector<16x16xf32>
    %237 = arith.addf %213, %236 : vector<16x16xf32>
    %c28 = arith.constant 28 : index
    %238 = memref.load %arg1[%c28] : memref<49xf32, #tpu.memory_space<smem>>
    %c0_156 = arith.constant 0 : index
    %c4_157 = arith.constant 4 : index
    %c0_158 = arith.constant 0 : index
    %239 = vector.load %arg4[%c0_156, %c4_157, %c0_158] : memref<7x22x16xf32, #tpu.memory_space<vmem>>, vector<1x16x16xf32>
    %240 = vector.shape_cast %239 : vector<1x16x16xf32> to vector<16x16xf32>
    %241 = vector.broadcast %238 : f32 to vector<16x16xf32>
    %242 = arith.mulf %241, %240 : vector<16x16xf32>
    %243 = arith.addf %219, %242 : vector<16x16xf32>
    %c29 = arith.constant 29 : index
    %244 = memref.load %arg1[%c29] : memref<49xf32, #tpu.memory_space<smem>>
    %c1_159 = arith.constant 1 : index
    %c4_160 = arith.constant 4 : index
    %c0_161 = arith.constant 0 : index
    %245 = vector.load %arg4[%c1_159, %c4_160, %c0_161] : memref<7x22x16xf32, #tpu.memory_space<vmem>>, vector<1x16x16xf32>
    %246 = vector.shape_cast %245 : vector<1x16x16xf32> to vector<16x16xf32>
    %247 = vector.broadcast %244 : f32 to vector<16x16xf32>
    %248 = arith.mulf %247, %246 : vector<16x16xf32>
    %249 = arith.addf %225, %248 : vector<16x16xf32>
    %c30 = arith.constant 30 : index
    %250 = memref.load %arg1[%c30] : memref<49xf32, #tpu.memory_space<smem>>
    %c2_162 = arith.constant 2 : index
    %c4_163 = arith.constant 4 : index
    %c0_164 = arith.constant 0 : index
    %251 = vector.load %arg4[%c2_162, %c4_163, %c0_164] : memref<7x22x16xf32, #tpu.memory_space<vmem>>, vector<1x16x16xf32>
    %252 = vector.shape_cast %251 : vector<1x16x16xf32> to vector<16x16xf32>
    %253 = vector.broadcast %250 : f32 to vector<16x16xf32>
    %254 = arith.mulf %253, %252 : vector<16x16xf32>
    %255 = arith.addf %231, %254 : vector<16x16xf32>
    %c31 = arith.constant 31 : index
    %256 = memref.load %arg1[%c31] : memref<49xf32, #tpu.memory_space<smem>>
    %c3_165 = arith.constant 3 : index
    %c4_166 = arith.constant 4 : index
    %c0_167 = arith.constant 0 : index
    %257 = vector.load %arg4[%c3_165, %c4_166, %c0_167] : memref<7x22x16xf32, #tpu.memory_space<vmem>>, vector<1x16x16xf32>
    %258 = vector.shape_cast %257 : vector<1x16x16xf32> to vector<16x16xf32>
    %259 = vector.broadcast %256 : f32 to vector<16x16xf32>
    %260 = arith.mulf %259, %258 : vector<16x16xf32>
    %261 = arith.addf %237, %260 : vector<16x16xf32>
    %c32 = arith.constant 32 : index
    %262 = memref.load %arg1[%c32] : memref<49xf32, #tpu.memory_space<smem>>
    %c4_168 = arith.constant 4 : index
    %c4_169 = arith.constant 4 : index
    %c0_170 = arith.constant 0 : index
    %263 = vector.load %arg4[%c4_168, %c4_169, %c0_170] : memref<7x22x16xf32, #tpu.memory_space<vmem>>, vector<1x16x16xf32>
    %264 = vector.shape_cast %263 : vector<1x16x16xf32> to vector<16x16xf32>
    %265 = vector.broadcast %262 : f32 to vector<16x16xf32>
    %266 = arith.mulf %265, %264 : vector<16x16xf32>
    %267 = arith.addf %243, %266 : vector<16x16xf32>
    %c33 = arith.constant 33 : index
    %268 = memref.load %arg1[%c33] : memref<49xf32, #tpu.memory_space<smem>>
    %c5_171 = arith.constant 5 : index
    %c4_172 = arith.constant 4 : index
    %c0_173 = arith.constant 0 : index
    %269 = vector.load %arg4[%c5_171, %c4_172, %c0_173] : memref<7x22x16xf32, #tpu.memory_space<vmem>>, vector<1x16x16xf32>
    %270 = vector.shape_cast %269 : vector<1x16x16xf32> to vector<16x16xf32>
    %271 = vector.broadcast %268 : f32 to vector<16x16xf32>
    %272 = arith.mulf %271, %270 : vector<16x16xf32>
    %273 = arith.addf %249, %272 : vector<16x16xf32>
    %c34 = arith.constant 34 : index
    %274 = memref.load %arg1[%c34] : memref<49xf32, #tpu.memory_space<smem>>
    %c6_174 = arith.constant 6 : index
    %c4_175 = arith.constant 4 : index
    %c0_176 = arith.constant 0 : index
    %275 = vector.load %arg4[%c6_174, %c4_175, %c0_176] : memref<7x22x16xf32, #tpu.memory_space<vmem>>, vector<1x16x16xf32>
    %276 = vector.shape_cast %275 : vector<1x16x16xf32> to vector<16x16xf32>
    %277 = vector.broadcast %274 : f32 to vector<16x16xf32>
    %278 = arith.mulf %277, %276 : vector<16x16xf32>
    %279 = arith.addf %255, %278 : vector<16x16xf32>
    %c35 = arith.constant 35 : index
    %280 = memref.load %arg1[%c35] : memref<49xf32, #tpu.memory_space<smem>>
    %c0_177 = arith.constant 0 : index
    %c5_178 = arith.constant 5 : index
    %c0_179 = arith.constant 0 : index
    %281 = vector.load %arg4[%c0_177, %c5_178, %c0_179] : memref<7x22x16xf32, #tpu.memory_space<vmem>>, vector<1x16x16xf32>
    %282 = vector.shape_cast %281 : vector<1x16x16xf32> to vector<16x16xf32>
    %283 = vector.broadcast %280 : f32 to vector<16x16xf32>
    %284 = arith.mulf %283, %282 : vector<16x16xf32>
    %285 = arith.addf %261, %284 : vector<16x16xf32>
    %c36 = arith.constant 36 : index
    %286 = memref.load %arg1[%c36] : memref<49xf32, #tpu.memory_space<smem>>
    %c1_180 = arith.constant 1 : index
    %c5_181 = arith.constant 5 : index
    %c0_182 = arith.constant 0 : index
    %287 = vector.load %arg4[%c1_180, %c5_181, %c0_182] : memref<7x22x16xf32, #tpu.memory_space<vmem>>, vector<1x16x16xf32>
    %288 = vector.shape_cast %287 : vector<1x16x16xf32> to vector<16x16xf32>
    %289 = vector.broadcast %286 : f32 to vector<16x16xf32>
    %290 = arith.mulf %289, %288 : vector<16x16xf32>
    %291 = arith.addf %267, %290 : vector<16x16xf32>
    %c37 = arith.constant 37 : index
    %292 = memref.load %arg1[%c37] : memref<49xf32, #tpu.memory_space<smem>>
    %c2_183 = arith.constant 2 : index
    %c5_184 = arith.constant 5 : index
    %c0_185 = arith.constant 0 : index
    %293 = vector.load %arg4[%c2_183, %c5_184, %c0_185] : memref<7x22x16xf32, #tpu.memory_space<vmem>>, vector<1x16x16xf32>
    %294 = vector.shape_cast %293 : vector<1x16x16xf32> to vector<16x16xf32>
    %295 = vector.broadcast %292 : f32 to vector<16x16xf32>
    %296 = arith.mulf %295, %294 : vector<16x16xf32>
    %297 = arith.addf %273, %296 : vector<16x16xf32>
    %c38 = arith.constant 38 : index
    %298 = memref.load %arg1[%c38] : memref<49xf32, #tpu.memory_space<smem>>
    %c3_186 = arith.constant 3 : index
    %c5_187 = arith.constant 5 : index
    %c0_188 = arith.constant 0 : index
    %299 = vector.load %arg4[%c3_186, %c5_187, %c0_188] : memref<7x22x16xf32, #tpu.memory_space<vmem>>, vector<1x16x16xf32>
    %300 = vector.shape_cast %299 : vector<1x16x16xf32> to vector<16x16xf32>
    %301 = vector.broadcast %298 : f32 to vector<16x16xf32>
    %302 = arith.mulf %301, %300 : vector<16x16xf32>
    %303 = arith.addf %279, %302 : vector<16x16xf32>
    %c39 = arith.constant 39 : index
    %304 = memref.load %arg1[%c39] : memref<49xf32, #tpu.memory_space<smem>>
    %c4_189 = arith.constant 4 : index
    %c5_190 = arith.constant 5 : index
    %c0_191 = arith.constant 0 : index
    %305 = vector.load %arg4[%c4_189, %c5_190, %c0_191] : memref<7x22x16xf32, #tpu.memory_space<vmem>>, vector<1x16x16xf32>
    %306 = vector.shape_cast %305 : vector<1x16x16xf32> to vector<16x16xf32>
    %307 = vector.broadcast %304 : f32 to vector<16x16xf32>
    %308 = arith.mulf %307, %306 : vector<16x16xf32>
    %309 = arith.addf %285, %308 : vector<16x16xf32>
    %c40 = arith.constant 40 : index
    %310 = memref.load %arg1[%c40] : memref<49xf32, #tpu.memory_space<smem>>
    %c5_192 = arith.constant 5 : index
    %c5_193 = arith.constant 5 : index
    %c0_194 = arith.constant 0 : index
    %311 = vector.load %arg4[%c5_192, %c5_193, %c0_194] : memref<7x22x16xf32, #tpu.memory_space<vmem>>, vector<1x16x16xf32>
    %312 = vector.shape_cast %311 : vector<1x16x16xf32> to vector<16x16xf32>
    %313 = vector.broadcast %310 : f32 to vector<16x16xf32>
    %314 = arith.mulf %313, %312 : vector<16x16xf32>
    %315 = arith.addf %291, %314 : vector<16x16xf32>
    %c41 = arith.constant 41 : index
    %316 = memref.load %arg1[%c41] : memref<49xf32, #tpu.memory_space<smem>>
    %c6_195 = arith.constant 6 : index
    %c5_196 = arith.constant 5 : index
    %c0_197 = arith.constant 0 : index
    %317 = vector.load %arg4[%c6_195, %c5_196, %c0_197] : memref<7x22x16xf32, #tpu.memory_space<vmem>>, vector<1x16x16xf32>
    %318 = vector.shape_cast %317 : vector<1x16x16xf32> to vector<16x16xf32>
    %319 = vector.broadcast %316 : f32 to vector<16x16xf32>
    %320 = arith.mulf %319, %318 : vector<16x16xf32>
    %321 = arith.addf %297, %320 : vector<16x16xf32>
    %c42 = arith.constant 42 : index
    %322 = memref.load %arg1[%c42] : memref<49xf32, #tpu.memory_space<smem>>
    %c0_198 = arith.constant 0 : index
    %c6_199 = arith.constant 6 : index
    %c0_200 = arith.constant 0 : index
    %323 = vector.load %arg4[%c0_198, %c6_199, %c0_200] : memref<7x22x16xf32, #tpu.memory_space<vmem>>, vector<1x16x16xf32>
    %324 = vector.shape_cast %323 : vector<1x16x16xf32> to vector<16x16xf32>
    %325 = vector.broadcast %322 : f32 to vector<16x16xf32>
    %326 = arith.mulf %325, %324 : vector<16x16xf32>
    %327 = arith.addf %303, %326 : vector<16x16xf32>
    %c43 = arith.constant 43 : index
    %328 = memref.load %arg1[%c43] : memref<49xf32, #tpu.memory_space<smem>>
    %c1_201 = arith.constant 1 : index
    %c6_202 = arith.constant 6 : index
    %c0_203 = arith.constant 0 : index
    %329 = vector.load %arg4[%c1_201, %c6_202, %c0_203] : memref<7x22x16xf32, #tpu.memory_space<vmem>>, vector<1x16x16xf32>
    %330 = vector.shape_cast %329 : vector<1x16x16xf32> to vector<16x16xf32>
    %331 = vector.broadcast %328 : f32 to vector<16x16xf32>
    %332 = arith.mulf %331, %330 : vector<16x16xf32>
    %333 = arith.addf %309, %332 : vector<16x16xf32>
    %c44 = arith.constant 44 : index
    %334 = memref.load %arg1[%c44] : memref<49xf32, #tpu.memory_space<smem>>
    %c2_204 = arith.constant 2 : index
    %c6_205 = arith.constant 6 : index
    %c0_206 = arith.constant 0 : index
    %335 = vector.load %arg4[%c2_204, %c6_205, %c0_206] : memref<7x22x16xf32, #tpu.memory_space<vmem>>, vector<1x16x16xf32>
    %336 = vector.shape_cast %335 : vector<1x16x16xf32> to vector<16x16xf32>
    %337 = vector.broadcast %334 : f32 to vector<16x16xf32>
    %338 = arith.mulf %337, %336 : vector<16x16xf32>
    %339 = arith.addf %315, %338 : vector<16x16xf32>
    %c45 = arith.constant 45 : index
    %340 = memref.load %arg1[%c45] : memref<49xf32, #tpu.memory_space<smem>>
    %c3_207 = arith.constant 3 : index
    %c6_208 = arith.constant 6 : index
    %c0_209 = arith.constant 0 : index
    %341 = vector.load %arg4[%c3_207, %c6_208, %c0_209] : memref<7x22x16xf32, #tpu.memory_space<vmem>>, vector<1x16x16xf32>
    %342 = vector.shape_cast %341 : vector<1x16x16xf32> to vector<16x16xf32>
    %343 = vector.broadcast %340 : f32 to vector<16x16xf32>
    %344 = arith.mulf %343, %342 : vector<16x16xf32>
    %345 = arith.addf %321, %344 : vector<16x16xf32>
    %c46 = arith.constant 46 : index
    %346 = memref.load %arg1[%c46] : memref<49xf32, #tpu.memory_space<smem>>
    %c4_210 = arith.constant 4 : index
    %c6_211 = arith.constant 6 : index
    %c0_212 = arith.constant 0 : index
    %347 = vector.load %arg4[%c4_210, %c6_211, %c0_212] : memref<7x22x16xf32, #tpu.memory_space<vmem>>, vector<1x16x16xf32>
    %348 = vector.shape_cast %347 : vector<1x16x16xf32> to vector<16x16xf32>
    %349 = vector.broadcast %346 : f32 to vector<16x16xf32>
    %350 = arith.mulf %349, %348 : vector<16x16xf32>
    %351 = arith.addf %327, %350 : vector<16x16xf32>
    %c47 = arith.constant 47 : index
    %352 = memref.load %arg1[%c47] : memref<49xf32, #tpu.memory_space<smem>>
    %c5_213 = arith.constant 5 : index
    %c6_214 = arith.constant 6 : index
    %c0_215 = arith.constant 0 : index
    %353 = vector.load %arg4[%c5_213, %c6_214, %c0_215] : memref<7x22x16xf32, #tpu.memory_space<vmem>>, vector<1x16x16xf32>
    %354 = vector.shape_cast %353 : vector<1x16x16xf32> to vector<16x16xf32>
    %355 = vector.broadcast %352 : f32 to vector<16x16xf32>
    %356 = arith.mulf %355, %354 : vector<16x16xf32>
    %357 = arith.addf %333, %356 : vector<16x16xf32>
    %c48 = arith.constant 48 : index
    %358 = memref.load %arg1[%c48] : memref<49xf32, #tpu.memory_space<smem>>
    %c6_216 = arith.constant 6 : index
    %c6_217 = arith.constant 6 : index
    %c0_218 = arith.constant 0 : index
    %359 = vector.load %arg4[%c6_216, %c6_217, %c0_218] : memref<7x22x16xf32, #tpu.memory_space<vmem>>, vector<1x16x16xf32>
    %360 = vector.shape_cast %359 : vector<1x16x16xf32> to vector<16x16xf32>
    %361 = vector.broadcast %358 : f32 to vector<16x16xf32>
    %362 = arith.mulf %361, %360 : vector<16x16xf32>
    %363 = arith.addf %339, %362 : vector<16x16xf32>
    %364 = arith.addf %363, %345 : vector<16x16xf32>
    %365 = arith.addf %351, %357 : vector<16x16xf32>
    %366 = arith.addf %364, %365 : vector<16x16xf32>
    %367 = arith.negf %366 : vector<16x16xf32>
    %368 = math.exp %367 : vector<16x16xf32>
    %cst_219 = arith.constant 1.000000e+00 : f32
    %369 = vector.broadcast %cst_219 : f32 to vector<16x16xf32>
    %370 = arith.addf %369, %368 : vector<16x16xf32>
    %371 = arith.divf %369, %370 : vector<16x16xf32>
    %c0_220 = arith.constant 0 : index
    %c0_221 = arith.constant 0 : index
    %c0_222 = arith.constant 0 : index
    %c0_223 = arith.constant 0 : index
    %372 = vector.load %arg2[%c0_220, %c0_221, %c0_222, %c0_223] : memref<1x4x16x16xf32, #tpu.memory_space<vmem>>, vector<1x1x16x16xf32>
    %373 = vector.shape_cast %372 : vector<1x1x16x16xf32> to vector<16x16xf32>
    %374 = arith.mulf %371, %373 : vector<16x16xf32>
    %c0_224 = arith.constant 0 : index
    %c0_225 = arith.constant 0 : index
    %c0_226 = arith.constant 0 : index
    %c0_227 = arith.constant 0 : index
    %375 = vector.load %arg3[%c0_224, %c0_225, %c0_226, %c0_227] : memref<1x4x16x16xf32, #tpu.memory_space<vmem>>, vector<1x1x16x16xf32>
    %376 = vector.shape_cast %375 : vector<1x1x16x16xf32> to vector<16x16xf32>
    %377 = vector.shape_cast %374 : vector<16x16xf32> to vector<1x1x16x16xf32>
    tpu.vector_store %arg3[%c0_224, %c0_225, %c0_226, %c0_227], %377 {strides = array<i32>} : memref<1x4x16x16xf32, #tpu.memory_space<vmem>>, vector<1x1x16x16xf32>,
    %c0_228 = arith.constant 0 : index
    %c1_229 = arith.constant 1 : index
    %c0_230 = arith.constant 0 : index
    %c0_231 = arith.constant 0 : index
    %378 = vector.load %arg2[%c0_228, %c1_229, %c0_230, %c0_231] : memref<1x4x16x16xf32, #tpu.memory_space<vmem>>, vector<1x1x16x16xf32>
    %379 = vector.shape_cast %378 : vector<1x1x16x16xf32> to vector<16x16xf32>
    %380 = arith.mulf %371, %379 : vector<16x16xf32>
    %c0_232 = arith.constant 0 : index
    %c1_233 = arith.constant 1 : index
    %c0_234 = arith.constant 0 : index
    %c0_235 = arith.constant 0 : index
    %381 = vector.load %arg3[%c0_232, %c1_233, %c0_234, %c0_235] : memref<1x4x16x16xf32, #tpu.memory_space<vmem>>, vector<1x1x16x16xf32>
    %382 = vector.shape_cast %381 : vector<1x1x16x16xf32> to vector<16x16xf32>
    %383 = vector.shape_cast %380 : vector<16x16xf32> to vector<1x1x16x16xf32>
    tpu.vector_store %arg3[%c0_232, %c1_233, %c0_234, %c0_235], %383 {strides = array<i32>} : memref<1x4x16x16xf32, #tpu.memory_space<vmem>>, vector<1x1x16x16xf32>,
    %c0_236 = arith.constant 0 : index
    %c2_237 = arith.constant 2 : index
    %c0_238 = arith.constant 0 : index
    %c0_239 = arith.constant 0 : index
    %384 = vector.load %arg2[%c0_236, %c2_237, %c0_238, %c0_239] : memref<1x4x16x16xf32, #tpu.memory_space<vmem>>, vector<1x1x16x16xf32>
    %385 = vector.shape_cast %384 : vector<1x1x16x16xf32> to vector<16x16xf32>
    %386 = arith.mulf %371, %385 : vector<16x16xf32>
    %c0_240 = arith.constant 0 : index
    %c2_241 = arith.constant 2 : index
    %c0_242 = arith.constant 0 : index
    %c0_243 = arith.constant 0 : index
    %387 = vector.load %arg3[%c0_240, %c2_241, %c0_242, %c0_243] : memref<1x4x16x16xf32, #tpu.memory_space<vmem>>, vector<1x1x16x16xf32>
    %388 = vector.shape_cast %387 : vector<1x1x16x16xf32> to vector<16x16xf32>
    %389 = vector.shape_cast %386 : vector<16x16xf32> to vector<1x1x16x16xf32>
    tpu.vector_store %arg3[%c0_240, %c2_241, %c0_242, %c0_243], %389 {strides = array<i32>} : memref<1x4x16x16xf32, #tpu.memory_space<vmem>>, vector<1x1x16x16xf32>,
    %c0_244 = arith.constant 0 : index
    %c3_245 = arith.constant 3 : index
    %c0_246 = arith.constant 0 : index
    %c0_247 = arith.constant 0 : index
    %390 = vector.load %arg2[%c0_244, %c3_245, %c0_246, %c0_247] : memref<1x4x16x16xf32, #tpu.memory_space<vmem>>, vector<1x1x16x16xf32>
    %391 = vector.shape_cast %390 : vector<1x1x16x16xf32> to vector<16x16xf32>
    %392 = arith.mulf %371, %391 : vector<16x16xf32>
    %c0_248 = arith.constant 0 : index
    %c3_249 = arith.constant 3 : index
    %c0_250 = arith.constant 0 : index
    %c0_251 = arith.constant 0 : index
    %393 = vector.load %arg3[%c0_248, %c3_249, %c0_250, %c0_251] : memref<1x4x16x16xf32, #tpu.memory_space<vmem>>, vector<1x1x16x16xf32>
    %394 = vector.shape_cast %393 : vector<1x1x16x16xf32> to vector<16x16xf32>
    %395 = vector.shape_cast %392 : vector<16x16xf32> to vector<1x1x16x16xf32>
    tpu.vector_store %arg3[%c0_248, %c3_249, %c0_250, %c0_251], %395 {strides = array<i32>} : memref<1x4x16x16xf32, #tpu.memory_space<vmem>>, vector<1x1x16x16xf32>,
    return
  }
  func.func @transform_0(%arg0: i32) -> i32 {
    %c0_i32 = arith.constant 0 : i32
    %c0_i32_0 = arith.constant 0 : i32
    return %c0_i32 : i32
  }
  func.func @transform_1(%arg0: i32) -> (i32, i32, i32, i32) {
    %c0_i32 = arith.constant 0 : i32
    %c0_i32_0 = arith.constant 0 : i32
    %c0_i32_1 = arith.constant 0 : i32
    %c0_i32_2 = arith.constant 0 : i32
    return %arg0, %c0_i32, %c0_i32_0, %c0_i32_1 : i32, i32, i32, i32
  }
  func.func @transform_2(%arg0: i32) -> (i32, i32, i32, i32) {
    %c0_i32 = arith.constant 0 : i32
    %c0_i32_0 = arith.constant 0 : i32
    %c0_i32_1 = arith.constant 0 : i32
    %c0_i32_2 = arith.constant 0 : i32
    return %arg0, %c0_i32, %c0_i32_0, %c0_i32_1 : i32, i32, i32, i32
  }
}

</mosaic_0001>

<llo_original>
// kernel: tpu_custom_call.1
$region0: #{tpu_custom_call.1}
  #allocation0 [shape = 'u32[]', space=smem, size = 0x4, offset = 0x4, fixed_abs, tag = 'smem constant byte address 0x4 - core index']
  #allocation1 [shape = 'u32[144,128]{1,0:T(1,128)}', space=vmem, size = 0x12000, scoped, tag = 'internal scratch']
  #allocation2 [shape = 'f32[7,22,16]{2,1,0:T(8,128)}', space=vmem, size = 0x15000, scoped, tag = 'scratch operand']
  %s0 = inlined_call_operand.hbm [shape: f32[49], index: 0, kind: input, shape index: {}]
  %s1 = inlined_call_operand.hbm [shape: f32[2,4,16,16], index: 1, kind: input, shape index: {}]
  %s2 = inlined_call_operand.hbm [shape: f32[2,4,16,16], index: 2, kind: output, shape index: {}]
  %s3 = sld [smem:[#allocation0]]
  $region49: #{tpu_custom_call.1} parent=0
    _
  %s5 = ssub.s32 1, %s3
  %s6 = scalar_select 0, %s5, %s3
  $region1: #{tpu_custom_call.1} parent=0
    #allocation3 [shape = 'u8[512]{0}', space=smem, size = 0x200, scoped, tag = 'input window, operand 0, single buffered']
    #allocation4 [shape = 's32[2]{0}', space=sflag, size = 0x8, scoped, tag = 'scoped memory for tpu_custom_call.1']
    #allocation5 [shape = 's32[2]{0}', space=sflag, size = 0x8, scoped, tag = 'scoped memory for tpu_custom_call.1']
    #allocation6 [shape = 's32[2]{0}', space=sflag, size = 0x8, scoped, tag = 'scoped memory for tpu_custom_call.1']
    #allocation7 [shape = 'u8[65536]{0}', space=vmem, size = 0x10000, scoped, tag = 'input window, operand 1']
    #allocation8 [shape = 'u8[65536]{0}', space=vmem, size = 0x10000, scoped, tag = 'output window, operand 0']
    %7 = vsyncpa [#allocation6], 0
    %8 = vsyncpa [#allocation4], 0
    %s9 = scalar_lea.sflag [#allocation4], 1
    %10 = vsyncpa %s9, 0
    %11 = vsyncpa [#allocation5], 0
    %s12 = scalar_lea.sflag [#allocation5], 1
    %13 = vsyncpa %s12, 0
    loop: start=0, step=1, limit=4
    $region2: #{tpu_custom_call.1} parent=1 // loop_pre_header
      _
    $region3: #{tpu_custom_call.1} parent=1 // loop_header
      %s15 = sphi 0, %s19
      %p16 = scmp.ge.s32.totalorder %s15, 4
      %s23 = sphi 0, %s23
      %s25 = sphi 0, %s23
      %s26 = sphi 0, %s25
      %s40 = sphi 0, %s26
      %s46 = sphi 0, %s48
      %s49 = sphi 0, %s46
      %s50 = sphi 0, %s49
      %s66 = sphi 0, %s50
      %s72 = sphi 0, %s74
      %s75 = sphi 0, %s72
      %s76 = sphi 0, %s75
      %s92 = sphi 0, %s76
    $region4: #{tpu_custom_call.1} parent=1 // loop_header_branch
      %18 = sbr.rel (%p16) target = $region8
    $region5: #{tpu_custom_call.1} parent=1 // loop_body
      %s20 = ssub.s32 %s15, 1
      %s21 = ssub.s32 %s15, 2
      %s22 = sadd.s32 %s15, 1
      %s24 = sadd.s32 %s23, 1
      %p27 = scmp.eq.s32.totalorder %s15, 1
      %p28 = scmp.ne.s32.totalorder %s23, %s25
      %p29 = scmp.eq.s32.totalorder %s15, 0
      %p30 = por %p28, %p29
      %p31 = scmp.ne.s32.totalorder %s23, %s25
      %p32 = scmp.eq.s32.totalorder %s20, 1
      %p33 = por %p31, %p32
      %p34 = scmp.ne.s32.totalorder %s25, %s26
      %p35 = scmp.eq.s32.totalorder %s20, 0
      %p36 = por %p34, %p35
      %p37 = scmp.ne.s32.totalorder %s25, %s26
      %p38 = scmp.eq.s32.totalorder %s21, 1
      %p39 = por %p37, %p38
      %p41 = scmp.ne.s32.totalorder %s26, %s40
      %p42 = scmp.eq.s32.totalorder %s21, 0
      %p43 = por %p41, %p42
      %s44 = ssub.s32 %s15, %s22
      %p45 = scmp.eq.s32.totalorder %s44, 0
      %s47 = sadd.s32 %s46, 1
      %s48 = scalar_select %p45, %s46, %s47
      %p51 = pneg %p45
      %p52 = scmp.eq.s32.totalorder %s15, 1
      %p53 = por %p51, %p52
      %p54 = scmp.ne.s32.totalorder %s46, %s49
      %p55 = scmp.eq.s32.totalorder %s15, 0
      %p56 = por %p54, %p55
      %p57 = scmp.ne.s32.totalorder %s46, %s49
      %p58 = scmp.eq.s32.totalorder %s20, 1
      %p59 = por %p57, %p58
      %p60 = scmp.ne.s32.totalorder %s49, %s50
      %p61 = scmp.eq.s32.totalorder %s20, 0
      %p62 = por %p60, %p61
      %p63 = scmp.ne.s32.totalorder %s49, %s50
      %p64 = scmp.eq.s32.totalorder %s21, 1
      %p65 = por %p63, %p64
      %p67 = scmp.ne.s32.totalorder %s50, %s66
      %p68 = scmp.eq.s32.totalorder %s21, 0
      %p69 = por %p67, %p68
      %s70 = ssub.s32 %s15, %s22
      %p71 = scmp.eq.s32.totalorder %s70, 0
      %s73 = sadd.s32 %s72, 1
      %s74 = scalar_select %p71, %s72, %s73
      %p77 = pneg %p71
      %p78 = scmp.eq.s32.totalorder %s15, 1
      %p79 = por %p77, %p78
      %p80 = scmp.ne.s32.totalorder %s72, %s75
      %p81 = scmp.eq.s32.totalorder %s15, 0
      %p82 = por %p80, %p81
      %p83 = scmp.ne.s32.totalorder %s72, %s75
      %p84 = scmp.eq.s32.totalorder %s20, 1
      %p85 = por %p83, %p84
      %p86 = scmp.ne.s32.totalorder %s75, %s76
      %p87 = scmp.eq.s32.totalorder %s20, 0
      %p88 = por %p86, %p87
      %p89 = scmp.ne.s32.totalorder %s75, %s76
      %p90 = scmp.eq.s32.totalorder %s21, 1
      %p91 = por %p89, %p90
      %p93 = scmp.ne.s32.totalorder %s76, %s92
      %p94 = scmp.eq.s32.totalorder %s21, 0
      %p95 = por %p93, %p94
      %p96 = scmp.le.s32.totalorder 1, %s15
      %p97 = scmp.lt.s32.totalorder %s15, 3
      %p98 = pnand %p96, %p97
      %p99 = pneg %p98
      // Predicated region
      $region9: #{tpu_custom_call.1} parent=5 // pred_check
        _
      $region10: #{tpu_custom_call.1} parent=5 // pred_check_branch
        %101 = sbr.rel (%p98) target = $region12
      $region11: #{tpu_custom_call.1} parent=5 // pred_region
        %s102 = ssub.s32 %s15, 1
        // Predicated region
        $region13: #{tpu_custom_call.1} parent=11 // pred_check
          %p103 = pneg %p36
        $region14: #{tpu_custom_call.1} parent=11 // pred_check_branch
          %105 = sbr.rel (%p103) target = $region16
        $region15: #{tpu_custom_call.1} parent=11 // pred_region
          %s107 = ssub.s32 16, 16
          %108 = vsyncadd [#allocation6], %s107
          %111 = dma.hbm_to_smem %s0, 16, [#allocation3], [#allocation6]
        $region16: #{tpu_custom_call.1} parent=11 // pred_fallthru
          _
      $region12: #{tpu_custom_call.1} parent=5 // pred_fallthru
        _
      %p112 = scmp.lt.s32.totalorder %s15, 2
      // Predicated region
      $region17: #{tpu_custom_call.1} parent=5 // pred_check
        %p113 = pneg %p112
      $region18: #{tpu_custom_call.1} parent=5 // pred_check_branch
        %115 = sbr.rel (%p113) target = $region20
      $region19: #{tpu_custom_call.1} parent=5 // pred_region
        // Predicated region
        $region21: #{tpu_custom_call.1} parent=19 // pred_check
          %p116 = pneg %p56
        $region22: #{tpu_custom_call.1} parent=19 // pred_check_branch
          %118 = sbr.rel (%p116) target = $region24
        $region23: #{tpu_custom_call.1} parent=19 // pred_region
          %s119 = sand.u32 %s46, 1
          %s120 = scalar_lea.sflag [#allocation4], %s119
          %s121 = sand.u32 %s46, 1
          %s122 = smul.addr %s121, 64
          %s123 = scalar_lea.vmem [#allocation7], %s122
          %s125 = ssub.s32 1024, 1024
          %126 = vsyncadd %s120, %s125
          %s127 = smul.addr %s15, 8
          %s128 = smul.addr %s127, 128
          %s129 = scalar_lea.hbm %s1, %s128
          %s130 = sshll.u32 %s123, 4
          %s131 = int_to_ptr.vmem [resolvable:$true] %s130
          %136 = dma.hbm_to_vmem [thread:$0]  %s129, 1024, %s131, %s120, 128, 128, 8
        $region24: #{tpu_custom_call.1} parent=19 // pred_fallthru
          _
      $region20: #{tpu_custom_call.1} parent=5 // pred_fallthru
        _
      %p137 = scmp.le.s32.totalorder 1, %s15
      %p138 = scmp.lt.s32.totalorder %s15, 3
      %p139 = pnand %p137, %p138
      %p140 = pneg %p139
      // Predicated region
      $region25: #{tpu_custom_call.1} parent=5 // pred_check
        _
      $region26: #{tpu_custom_call.1} parent=5 // pred_check_branch
        %142 = sbr.rel (%p139) target = $region28
      $region27: #{tpu_custom_call.1} parent=5 // pred_region
        %s143 = ssub.s32 %s15, 1
        // Predicated region
        $region29: #{tpu_custom_call.1} parent=27 // pred_check
          %p144 = pneg %p36
        $region30: #{tpu_custom_call.1} parent=27 // pred_check_branch
          %146 = sbr.rel (%p144) target = $region32
        $region31: #{tpu_custom_call.1} parent=27 // pred_region
          %147 = dma.done [#allocation6], 16
        $region32: #{tpu_custom_call.1} parent=27 // pred_fallthru
          _
        %s148 = sand.u32 %s49, 1
        %s149 = scalar_lea.sflag [#allocation4], %s148
        %s150 = sand.u32 %s49, 1
        %s151 = smul.addr %s150, 64
        %s152 = scalar_lea.vmem [#allocation7], %s151
        // Predicated region
        $region33: #{tpu_custom_call.1} parent=27 // pred_check
          %p153 = pneg %p62
        $region34: #{tpu_custom_call.1} parent=27 // pred_check_branch
          %155 = sbr.rel (%p153) target = $region36
        $region35: #{tpu_custom_call.1} parent=27 // pred_region
          %156 = dma.done %s149, 1024
        $region36: #{tpu_custom_call.1} parent=27 // pred_fallthru
          _
        %157 = sfence
        %p158 = pneg %p36
        %p159 = pneg %p33
        %s160 = sand.u32 %s49, 1
        %s161 = scalar_lea.sflag [#allocation4], %s160
        %s162 = sand.u32 %s49, 1
        %s163 = smul.addr %s162, 64
        %s164 = scalar_lea.vmem [#allocation7], %s163
        %p165 = pneg %p62
        %p166 = pneg %p59
        %p167 = pneg %p88
        %p168 = pneg %p85
        %s169 = sand.u32 %s75, 1
        %s170 = scalar_lea.sflag [#allocation5], %s169
        %s171 = sand.u32 %s75, 1
        %s172 = smul.addr %s171, 64
        %s173 = scalar_lea.vmem [#allocation8], %s172
        %v174 = vld [vmem:[%s152] sm:$0xff]
        %v175 = vld [vmem:[%s152 + $0x8] sm:$0xff]
        %s176 = scalar_lea.vmem %s152, 16 [#allocation7]
        %v177 = vld [vmem:[%s176] sm:$0xff]
        %v178 = vld [vmem:[%s176 + $0x8] sm:$0xff]
        %v179 = vmax.f32 %v174, %v177
        %v180 = vmax.f32 %v175, %v178
        %s181 = scalar_lea.vmem %s152, 32 [#allocation7]
        %v182 = vld [vmem:[%s181] sm:$0xff]
        %v183 = vld [vmem:[%s181 + $0x8] sm:$0xff]
        %v184 = vmax.f32 %v179, %v182
        %v185 = vmax.f32 %v180, %v183
        %s186 = scalar_lea.vmem %s152, 48 [#allocation7]
        %v187 = vld [vmem:[%s186] sm:$0xff]
        %v188 = vld [vmem:[%s186 + $0x8] sm:$0xff]
        %v189 = vmax.f32 %v184, %v187
        %v190 = vmax.f32 %v185, %v188
        %vm191 = vcmask 124928
        %192 = vst.msk [vmem:[#allocation2] sm:$0x7] %vm191, 0.0
        %193 = vst.msk [vmem:[#allocation2 + $0x18] sm:$0x7] %vm191, 0.0
        %194 = vst.msk [vmem:[#allocation2 + $0x30] sm:$0x7] %vm191, 0.0
        %195 = vst.msk [vmem:[#allocation2 + $0x48] sm:$0x7] %vm191, 0.0
        %196 = vst.msk [vmem:[#allocation2 + $0x60] sm:$0x7] %vm191, 0.0
        %197 = vst.msk [vmem:[#allocation2 + $0x78] sm:$0x7] %vm191, 0.0
        %198 = vst.msk [vmem:[#allocation2 + $0x90] sm:$0x7] %vm191, 0.0
        %199 = vst.msk [vmem:[#allocation2 + $0x13] sm:$0x7] %vm191, 0.0
        %200 = vst.msk [vmem:[#allocation2 + $0x2b] sm:$0x7] %vm191, 0.0
        %201 = vst.msk [vmem:[#allocation2 + $0x43] sm:$0x7] %vm191, 0.0
        %202 = vst.msk [vmem:[#allocation2 + $0x5b] sm:$0x7] %vm191, 0.0
        %203 = vst.msk [vmem:[#allocation2 + $0x73] sm:$0x7] %vm191, 0.0
        %204 = vst.msk [vmem:[#allocation2 + $0x8b] sm:$0x7] %vm191, 0.0
        %205 = vst.msk [vmem:[#allocation2 + $0xa3] sm:$0x7] %vm191, 0.0
        %vm206 = vcmask 23552
        %207 = vst.msk [vmem:[#allocation2 + $0x3] sm:$0xff] %vm206, 0.0
        %208 = vst.msk [vmem:[#allocation2 + $0xb] sm:$0xff] %vm206, 0.0
        %211 = vrot.lane.b32.xlu0 %v189, 3
        %v212 = vpop.permute.xlu0 %211
        %213 = vrot.lane.b32.xlu0 %v190, 3
        %v214 = vpop.permute.xlu0 %213
        %vm217 = vcmask 130072
        %218 = vst.msk [vmem:[#allocation2 + $0x3] sm:$0xff] %vm217, %v212
        %219 = vst.msk [vmem:[#allocation2 + $0xb] sm:$0xff] %vm217, %v214
        %s220 = scalar_lea.vmem [#allocation2], 24
        %vm221 = vcmask 15360
        %222 = vst.msk [vmem:[%s220 + $0x3] sm:$0xff] %vm221, 0.0
        %223 = vst.msk [vmem:[%s220 + $0xb] sm:$0xff] %vm221, 0.0
        %224 = vrot.lane.b32.xlu0 %v189, 2
        %v225 = vpop.permute.xlu0 %224
        %226 = vrot.lane.b32.xlu0 %v190, 2
        %v227 = vpop.permute.xlu0 %226
        %vm230 = vcmask 130064
        %231 = vst.msk [vmem:[%s220 + $0x3] sm:$0xff] %vm230, %v225
        %232 = vst.msk [vmem:[%s220 + $0xb] sm:$0xff] %vm230, %v227
        %s233 = scalar_lea.vmem [#allocation2], 48
        %vm234 = vcmask 7168
        %235 = vst.msk [vmem:[%s233 + $0x3] sm:$0xff] %vm234, 0.0
        %236 = vst.msk [vmem:[%s233 + $0xb] sm:$0xff] %vm234, 0.0
        %237 = vrot.lane.b32.xlu0 %v189, 1
        %v238 = vpop.permute.xlu0 %237
        %239 = vrot.lane.b32.xlu0 %v190, 1
        %v240 = vpop.permute.xlu0 %239
        %vm243 = vcmask 130056
        %244 = vst.msk [vmem:[%s233 + $0x3] sm:$0xff] %vm243, %v238
        %245 = vst.msk [vmem:[%s233 + $0xb] sm:$0xff] %vm243, %v240
        %s246 = scalar_lea.vmem [#allocation2], 72
        %vm247 = vcmask 130048
        %248 = vst.msk [vmem:[%s246 + $0x3] sm:$0xff] %vm247, %v189
        %249 = vst.msk [vmem:[%s246 + $0xb] sm:$0xff] %vm247, %v190
        %s250 = scalar_lea.vmem [#allocation2], 96
        %vm251 = vcmask 130168
        %252 = vst.msk [vmem:[%s250 + $0x3] sm:$0xff] %vm251, 0.0
        %253 = vst.msk [vmem:[%s250 + $0xb] sm:$0xff] %vm251, 0.0
        %254 = vrot.lane.b32.xlu0 %v189, 127
        %v255 = vpop.permute.xlu0 %254
        %256 = vrot.lane.b32.xlu0 %v190, 127
        %v257 = vpop.permute.xlu0 %256
        %vm260 = vcmask 121856
        %261 = vst.msk [vmem:[%s250 + $0x3] sm:$0xff] %vm260, %v255
        %262 = vst.msk [vmem:[%s250 + $0xb] sm:$0xff] %vm260, %v257
        %s263 = scalar_lea.vmem [#allocation2], 120
        %vm264 = vcmask 130160
        %265 = vst.msk [vmem:[%s263 + $0x3] sm:$0xff] %vm264, 0.0
        %266 = vst.msk [vmem:[%s263 + $0xb] sm:$0xff] %vm264, 0.0
        %267 = vrot.lane.b32.xlu0 %v189, 126
        %v268 = vpop.permute.xlu0 %267
        %269 = vrot.lane.b32.xlu0 %v190, 126
        %v270 = vpop.permute.xlu0 %269
        %vm273 = vcmask 113664
        %274 = vst.msk [vmem:[%s263 + $0x3] sm:$0xff] %vm273, %v268
        %275 = vst.msk [vmem:[%s263 + $0xb] sm:$0xff] %vm273, %v270
        %s276 = scalar_lea.vmem [#allocation2], 144
        %vm277 = vcmask 130152
        %278 = vst.msk [vmem:[%s276 + $0x3] sm:$0xff] %vm277, 0.0
        %279 = vst.msk [vmem:[%s276 + $0xb] sm:$0xff] %vm277, 0.0
        %280 = vrot.lane.b32.xlu0 %v189, 125
        %v281 = vpop.permute.xlu0 %280
        %282 = vrot.lane.b32.xlu0 %v190, 125
        %v283 = vpop.permute.xlu0 %282
        %vm286 = vcmask 105472
        %287 = vst.msk [vmem:[%s276 + $0x3] sm:$0xff] %vm286, %v281
        %288 = vst.msk [vmem:[%s276 + $0xb] sm:$0xff] %vm286, %v283
        %s289 = sld [smem:[#allocation3]]
        %v290 = vld [vmem:[#allocation2] sm:$0xff]
        %v291 = vld [vmem:[#allocation2 + $0x8] sm:$0xff]
        %v292 = vstv %s289
        %v293 = vmul.f32 %v292, %v290
        %v294 = vmul.f32 %v292, %v291
        %v295 = vadd.f32 %v293, 0.0
        %v296 = vadd.f32 %v294, 0.0
        %s297 = sld [smem:[#allocation3 + $0x1]]
        %v298 = vld [vmem:[%s220] sm:$0xff]
        %v299 = vld [vmem:[%s220 + $0x8] sm:$0xff]
        %v300 = vstv %s297
        %v301 = vmul.f32 %v300, %v298
        %v302 = vmul.f32 %v300, %v299
        %v303 = vadd.f32 %v301, 0.0
        %v304 = vadd.f32 %v302, 0.0
        %s305 = sld [smem:[#allocation3 + $0x2]]
        %v306 = vld [vmem:[%s233] sm:$0xff]
        %v307 = vld [vmem:[%s233 + $0x8] sm:$0xff]
        %v308 = vstv %s305
        %v309 = vmul.f32 %v308, %v306
        %v310 = vmul.f32 %v308, %v307
        %v311 = vadd.f32 %v309, 0.0
        %v312 = vadd.f32 %v310, 0.0
        %s313 = sld [smem:[#allocation3 + $0x3]]
        %v314 = vld [vmem:[%s246] sm:$0xff]
        %v315 = vld [vmem:[%s246 + $0x8] sm:$0xff]
        %v316 = vstv %s313
        %v317 = vmul.f32 %v316, %v314
        %v318 = vmul.f32 %v316, %v315
        %v319 = vadd.f32 %v317, 0.0
        %v320 = vadd.f32 %v318, 0.0
        %s321 = sld [smem:[#allocation3 + $0x4]]
        %v322 = vld [vmem:[%s250] sm:$0xff]
        %v323 = vld [vmem:[%s250 + $0x8] sm:$0xff]
        %v324 = vstv %s321
        %v325 = vmul.f32 %v324, %v322
        %v326 = vmul.f32 %v324, %v323
        %v327 = vadd.f32 %v295, %v325
        %v328 = vadd.f32 %v296, %v326
        %s329 = sld [smem:[#allocation3 + $0x5]]
        %v330 = vld [vmem:[%s263] sm:$0xff]
        %v331 = vld [vmem:[%s263 + $0x8] sm:$0xff]
        %v332 = vstv %s329
        %v333 = vmul.f32 %v332, %v330
        %v334 = vmul.f32 %v332, %v331
        %v335 = vadd.f32 %v303, %v333
        %v336 = vadd.f32 %v304, %v334
        %s337 = sld [smem:[#allocation3 + $0x6]]
        %v338 = vld [vmem:[%s276] sm:$0xff]
        %v339 = vld [vmem:[%s276 + $0x8] sm:$0xff]
        %v340 = vstv %s337
        %v341 = vmul.f32 %v340, %v338
        %v342 = vmul.f32 %v340, %v339
        %v343 = vadd.f32 %v311, %v341
        %v344 = vadd.f32 %v312, %v342
        %s345 = sld [smem:[#allocation3 + $0x7]]
        %v346 = vld [vmem:[#allocation2 + $0x1] sm:$0xff]
        %v347 = vld [vmem:[#allocation2 + $0x9] sm:$0xff]
        %v348 = vstv %s345
        %v349 = vmul.f32 %v348, %v346
        %v350 = vmul.f32 %v348, %v347
        %v351 = vadd.f32 %v319, %v349
        %v352 = vadd.f32 %v320, %v350
        %s353 = sld [smem:[#allocation3 + $0x8]]
        %v354 = vld [vmem:[%s220 + $0x1] sm:$0xff]
        %v355 = vld [vmem:[%s220 + $0x9] sm:$0xff]
        %v356 = vstv %s353
        %v357 = vmul.f32 %v356, %v354
        %v358 = vmul.f32 %v356, %v355
        %v359 = vadd.f32 %v327, %v357
        %v360 = vadd.f32 %v328, %v358
        %s361 = sld [smem:[#allocation3 + $0x9]]
        %v362 = vld [vmem:[%s233 + $0x1] sm:$0xff]
        %v363 = vld [vmem:[%s233 + $0x9] sm:$0xff]
        %v364 = vstv %s361
        %v365 = vmul.f32 %v364, %v362
        %v366 = vmul.f32 %v364, %v363
        %v367 = vadd.f32 %v335, %v365
        %v368 = vadd.f32 %v336, %v366
        %s369 = sld [smem:[#allocation3 + $0xa]]
        %v370 = vld [vmem:[%s246 + $0x1] sm:$0xff]
        %v371 = vld [vmem:[%s246 + $0x9] sm:$0xff]
        %v372 = vstv %s369
        %v373 = vmul.f32 %v372, %v370
        %v374 = vmul.f32 %v372, %v371
        %v375 = vadd.f32 %v343, %v373
        %v376 = vadd.f32 %v344, %v374
        %s377 = sld [smem:[#allocation3 + $0xb]]
        %v378 = vld [vmem:[%s250 + $0x1] sm:$0xff]
        %v379 = vld [vmem:[%s250 + $0x9] sm:$0xff]
        %v380 = vstv %s377
        %v381 = vmul.f32 %v380, %v378
        %v382 = vmul.f32 %v380, %v379
        %v383 = vadd.f32 %v351, %v381
        %v384 = vadd.f32 %v352, %v382
        %s385 = sld [smem:[#allocation3 + $0xc]]
        %v386 = vld [vmem:[%s263 + $0x1] sm:$0xff]
        %v387 = vld [vmem:[%s263 + $0x9] sm:$0xff]
        %v388 = vstv %s385
        %v389 = vmul.f32 %v388, %v386
        %v390 = vmul.f32 %v388, %v387
        %v391 = vadd.f32 %v359, %v389
        %v392 = vadd.f32 %v360, %v390
        %s393 = sld [smem:[#allocation3 + $0xd]]
        %v394 = vld [vmem:[%s276 + $0x1] sm:$0xff]
        %v395 = vld [vmem:[%s276 + $0x9] sm:$0xff]
        %v396 = vstv %s393
        %v397 = vmul.f32 %v396, %v394
        %v398 = vmul.f32 %v396, %v395
        %v399 = vadd.f32 %v367, %v397
        %v400 = vadd.f32 %v368, %v398
        %s401 = sld [smem:[#allocation3 + $0xe]]
        %v402 = vld [vmem:[#allocation2 + $0x2] sm:$0xff]
        %v403 = vld [vmem:[#allocation2 + $0xa] sm:$0xff]
        %v404 = vstv %s401
        %v405 = vmul.f32 %v404, %v402
        %v406 = vmul.f32 %v404, %v403
        %v407 = vadd.f32 %v375, %v405
        %v408 = vadd.f32 %v376, %v406
        %s409 = sld [smem:[#allocation3 + $0xf]]
        %v410 = vld [vmem:[%s220 + $0x2] sm:$0xff]
        %v411 = vld [vmem:[%s220 + $0xa] sm:$0xff]
        %v412 = vstv %s409
        %v413 = vmul.f32 %v412, %v410
        %v414 = vmul.f32 %v412, %v411
        %v415 = vadd.f32 %v383, %v413
        %v416 = vadd.f32 %v384, %v414
        %s417 = sld [smem:[#allocation3 + $0x10]]
        %v418 = vld [vmem:[%s233 + $0x2] sm:$0xff]
        %v419 = vld [vmem:[%s233 + $0xa] sm:$0xff]
        %v420 = vstv %s417
        %v421 = vmul.f32 %v420, %v418
        %v422 = vmul.f32 %v420, %v419
        %v423 = vadd.f32 %v391, %v421
        %v424 = vadd.f32 %v392, %v422
        %s425 = sld [smem:[#allocation3 + $0x11]]
        %v426 = vld [vmem:[%s246 + $0x2] sm:$0xff]
        %v427 = vld [vmem:[%s246 + $0xa] sm:$0xff]
        %v428 = vstv %s425
        %v429 = vmul.f32 %v428, %v426
        %v430 = vmul.f32 %v428, %v427
        %v431 = vadd.f32 %v399, %v429
        %v432 = vadd.f32 %v400, %v430
        %s433 = sld [smem:[#allocation3 + $0x12]]
        %v434 = vld [vmem:[%s250 + $0x2] sm:$0xff]
        %v435 = vld [vmem:[%s250 + $0xa] sm:$0xff]
        %v436 = vstv %s433
        %v437 = vmul.f32 %v436, %v434
        %v438 = vmul.f32 %v436, %v435
        %v439 = vadd.f32 %v407, %v437
        %v440 = vadd.f32 %v408, %v438
        %s441 = sld [smem:[#allocation3 + $0x13]]
        %v442 = vld [vmem:[%s263 + $0x2] sm:$0xff]
        %v443 = vld [vmem:[%s263 + $0xa] sm:$0xff]
        %v444 = vstv %s441
        %v445 = vmul.f32 %v444, %v442
        %v446 = vmul.f32 %v444, %v443
        %v447 = vadd.f32 %v415, %v445
        %v448 = vadd.f32 %v416, %v446
        %s449 = sld [smem:[#allocation3 + $0x14]]
        %v450 = vld [vmem:[%s276 + $0x2] sm:$0xff]
        %v451 = vld [vmem:[%s276 + $0xa] sm:$0xff]
        %v452 = vstv %s449
        %v453 = vmul.f32 %v452, %v450
        %v454 = vmul.f32 %v452, %v451
        %v455 = vadd.f32 %v423, %v453
        %v456 = vadd.f32 %v424, %v454
        %s457 = sld [smem:[#allocation3 + $0x15]]
        %v458 = vld [vmem:[#allocation2 + $0x3] sm:$0xff]
        %v459 = vld [vmem:[#allocation2 + $0xb] sm:$0xff]
        %v460 = vstv %s457
        %v461 = vmul.f32 %v460, %v458
        %v462 = vmul.f32 %v460, %v459
        %v463 = vadd.f32 %v431, %v461
        %v464 = vadd.f32 %v432, %v462
        %s465 = sld [smem:[#allocation3 + $0x16]]
        %v466 = vld [vmem:[%s220 + $0x3] sm:$0xff]
        %v467 = vld [vmem:[%s220 + $0xb] sm:$0xff]
        %v468 = vstv %s465
        %v469 = vmul.f32 %v468, %v466
        %v470 = vmul.f32 %v468, %v467
        %v471 = vadd.f32 %v439, %v469
        %v472 = vadd.f32 %v440, %v470
        %s473 = sld [smem:[#allocation3 + $0x17]]
        %v474 = vld [vmem:[%s233 + $0x3] sm:$0xff]
        %v475 = vld [vmem:[%s233 + $0xb] sm:$0xff]
        %v476 = vstv %s473
        %v477 = vmul.f32 %v476, %v474
        %v478 = vmul.f32 %v476, %v475
        %v479 = vadd.f32 %v447, %v477
        %v480 = vadd.f32 %v448, %v478
        %s481 = sld [smem:[#allocation3 + $0x18]]
        %v482 = vld [vmem:[%s246 + $0x3] sm:$0xff]
        %v483 = vld [vmem:[%s246 + $0xb] sm:$0xff]
        %v484 = vstv %s481
        %v485 = vmul.f32 %v484, %v482
        %v486 = vmul.f32 %v484, %v483
        %v487 = vadd.f32 %v455, %v485
        %v488 = vadd.f32 %v456, %v486
        %s489 = sld [smem:[#allocation3 + $0x19]]
        %v490 = vld [vmem:[%s250 + $0x3] sm:$0xff]
        %v491 = vld [vmem:[%s250 + $0xb] sm:$0xff]
        %v492 = vstv %s489
        %v493 = vmul.f32 %v492, %v490
        %v494 = vmul.f32 %v492, %v491
        %v495 = vadd.f32 %v463, %v493
        %v496 = vadd.f32 %v464, %v494
        %s497 = sld [smem:[#allocation3 + $0x1a]]
        %v498 = vld [vmem:[%s263 + $0x3] sm:$0xff]
        %v499 = vld [vmem:[%s263 + $0xb] sm:$0xff]
        %v500 = vstv %s497
        %v501 = vmul.f32 %v500, %v498
        %v502 = vmul.f32 %v500, %v499
        %v503 = vadd.f32 %v471, %v501
        %v504 = vadd.f32 %v472, %v502
        %s505 = sld [smem:[#allocation3 + $0x1b]]
        %v506 = vld [vmem:[%s276 + $0x3] sm:$0xff]
        %v507 = vld [vmem:[%s276 + $0xb] sm:$0xff]
        %v508 = vstv %s505
        %v509 = vmul.f32 %v508, %v506
        %v510 = vmul.f32 %v508, %v507
        %v511 = vadd.f32 %v479, %v509
        %v512 = vadd.f32 %v480, %v510
        %s513 = sld [smem:[#allocation3 + $0x1c]]
        %v514 = vld [vmem:[#allocation2 + $0x4] sm:$0xff]
        %v515 = vld [vmem:[#allocation2 + $0xc] sm:$0xff]
        %v516 = vstv %s513
        %v517 = vmul.f32 %v516, %v514
        %v518 = vmul.f32 %v516, %v515
        %v519 = vadd.f32 %v487, %v517
        %v520 = vadd.f32 %v488, %v518
        %s521 = sld [smem:[#allocation3 + $0x1d]]
        %v522 = vld [vmem:[%s220 + $0x4] sm:$0xff]
        %v523 = vld [vmem:[%s220 + $0xc] sm:$0xff]
        %v524 = vstv %s521
        %v525 = vmul.f32 %v524, %v522
        %v526 = vmul.f32 %v524, %v523
        %v527 = vadd.f32 %v495, %v525
        %v528 = vadd.f32 %v496, %v526
        %s529 = sld [smem:[#allocation3 + $0x1e]]
        %v530 = vld [vmem:[%s233 + $0x4] sm:$0xff]
        %v531 = vld [vmem:[%s233 + $0xc] sm:$0xff]
        %v532 = vstv %s529
        %v533 = vmul.f32 %v532, %v530
        %v534 = vmul.f32 %v532, %v531
        %v535 = vadd.f32 %v503, %v533
        %v536 = vadd.f32 %v504, %v534
        %s537 = sld [smem:[#allocation3 + $0x1f]]
        %v538 = vld [vmem:[%s246 + $0x4] sm:$0xff]
        %v539 = vld [vmem:[%s246 + $0xc] sm:$0xff]
        %v540 = vstv %s537
        %v541 = vmul.f32 %v540, %v538
        %v542 = vmul.f32 %v540, %v539
        %v543 = vadd.f32 %v511, %v541
        %v544 = vadd.f32 %v512, %v542
        %s545 = sld [smem:[#allocation3 + $0x20]]
        %v546 = vld [vmem:[%s250 + $0x4] sm:$0xff]
        %v547 = vld [vmem:[%s250 + $0xc] sm:$0xff]
        %v548 = vstv %s545
        %v549 = vmul.f32 %v548, %v546
        %v550 = vmul.f32 %v548, %v547
        %v551 = vadd.f32 %v519, %v549
        %v552 = vadd.f32 %v520, %v550
        %s553 = sld [smem:[#allocation3 + $0x21]]
        %v554 = vld [vmem:[%s263 + $0x4] sm:$0xff]
        %v555 = vld [vmem:[%s263 + $0xc] sm:$0xff]
        %v556 = vstv %s553
        %v557 = vmul.f32 %v556, %v554
        %v558 = vmul.f32 %v556, %v555
        %v559 = vadd.f32 %v527, %v557
        %v560 = vadd.f32 %v528, %v558
        %s561 = sld [smem:[#allocation3 + $0x22]]
        %v562 = vld [vmem:[%s276 + $0x4] sm:$0xff]
        %v563 = vld [vmem:[%s276 + $0xc] sm:$0xff]
        %v564 = vstv %s561
        %v565 = vmul.f32 %v564, %v562
        %v566 = vmul.f32 %v564, %v563
        %v567 = vadd.f32 %v535, %v565
        %v568 = vadd.f32 %v536, %v566
        %s569 = sld [smem:[#allocation3 + $0x23]]
        %v570 = vld [vmem:[#allocation2 + $0x5] sm:$0xff]
        %v571 = vld [vmem:[#allocation2 + $0xd] sm:$0xff]
        %v572 = vstv %s569
        %v573 = vmul.f32 %v572, %v570
        %v574 = vmul.f32 %v572, %v571
        %v575 = vadd.f32 %v543, %v573
        %v576 = vadd.f32 %v544, %v574
        %s577 = sld [smem:[#allocation3 + $0x24]]
        %v578 = vld [vmem:[%s220 + $0x5] sm:$0xff]
        %v579 = vld [vmem:[%s220 + $0xd] sm:$0xff]
        %v580 = vstv %s577
        %v581 = vmul.f32 %v580, %v578
        %v582 = vmul.f32 %v580, %v579
        %v583 = vadd.f32 %v551, %v581
        %v584 = vadd.f32 %v552, %v582
        %s585 = sld [smem:[#allocation3 + $0x25]]
        %v586 = vld [vmem:[%s233 + $0x5] sm:$0xff]
        %v587 = vld [vmem:[%s233 + $0xd] sm:$0xff]
        %v588 = vstv %s585
        %v589 = vmul.f32 %v588, %v586
        %v590 = vmul.f32 %v588, %v587
        %v591 = vadd.f32 %v559, %v589
        %v592 = vadd.f32 %v560, %v590
        %s593 = sld [smem:[#allocation3 + $0x26]]
        %v594 = vld [vmem:[%s246 + $0x5] sm:$0xff]
        %v595 = vld [vmem:[%s246 + $0xd] sm:$0xff]
        %v596 = vstv %s593
        %v597 = vmul.f32 %v596, %v594
        %v598 = vmul.f32 %v596, %v595
        %v599 = vadd.f32 %v567, %v597
        %v600 = vadd.f32 %v568, %v598
        %s601 = sld [smem:[#allocation3 + $0x27]]
        %v602 = vld [vmem:[%s250 + $0x5] sm:$0xff]
        %v603 = vld [vmem:[%s250 + $0xd] sm:$0xff]
        %v604 = vstv %s601
        %v605 = vmul.f32 %v604, %v602
        %v606 = vmul.f32 %v604, %v603
        %v607 = vadd.f32 %v575, %v605
        %v608 = vadd.f32 %v576, %v606
        %s609 = sld [smem:[#allocation3 + $0x28]]
        %v610 = vld [vmem:[%s263 + $0x5] sm:$0xff]
        %v611 = vld [vmem:[%s263 + $0xd] sm:$0xff]
        %v612 = vstv %s609
        %v613 = vmul.f32 %v612, %v610
        %v614 = vmul.f32 %v612, %v611
        %v615 = vadd.f32 %v583, %v613
        %v616 = vadd.f32 %v584, %v614
        %s617 = sld [smem:[#allocation3 + $0x29]]
        %v618 = vld [vmem:[%s276 + $0x5] sm:$0xff]
        %v619 = vld [vmem:[%s276 + $0xd] sm:$0xff]
        %v620 = vstv %s617
        %v621 = vmul.f32 %v620, %v618
        %v622 = vmul.f32 %v620, %v619
        %v623 = vadd.f32 %v591, %v621
        %v624 = vadd.f32 %v592, %v622
        %s625 = sld [smem:[#allocation3 + $0x2a]]
        %v626 = vld [vmem:[#allocation2 + $0x6] sm:$0xff]
        %v627 = vld [vmem:[#allocation2 + $0xe] sm:$0xff]
        %v628 = vstv %s625
        %v629 = vmul.f32 %v628, %v626
        %v630 = vmul.f32 %v628, %v627
        %v631 = vadd.f32 %v599, %v629
        %v632 = vadd.f32 %v600, %v630
        %s633 = sld [smem:[#allocation3 + $0x2b]]
        %v634 = vld [vmem:[%s220 + $0x6] sm:$0xff]
        %v635 = vld [vmem:[%s220 + $0xe] sm:$0xff]
        %v636 = vstv %s633
        %v637 = vmul.f32 %v636, %v634
        %v638 = vmul.f32 %v636, %v635
        %v639 = vadd.f32 %v607, %v637
        %v640 = vadd.f32 %v608, %v638
        %s641 = sld [smem:[#allocation3 + $0x2c]]
        %v642 = vld [vmem:[%s233 + $0x6] sm:$0xff]
        %v643 = vld [vmem:[%s233 + $0xe] sm:$0xff]
        %v644 = vstv %s641
        %v645 = vmul.f32 %v644, %v642
        %v646 = vmul.f32 %v644, %v643
        %v647 = vadd.f32 %v615, %v645
        %v648 = vadd.f32 %v616, %v646
        %s649 = sld [smem:[#allocation3 + $0x2d]]
        %v650 = vld [vmem:[%s246 + $0x6] sm:$0xff]
        %v651 = vld [vmem:[%s246 + $0xe] sm:$0xff]
        %v652 = vstv %s649
        %v653 = vmul.f32 %v652, %v650
        %v654 = vmul.f32 %v652, %v651
        %v655 = vadd.f32 %v623, %v653
        %v656 = vadd.f32 %v624, %v654
        %s657 = sld [smem:[#allocation3 + $0x2e]]
        %v658 = vld [vmem:[%s250 + $0x6] sm:$0xff]
        %v659 = vld [vmem:[%s250 + $0xe] sm:$0xff]
        %v660 = vstv %s657
        %v661 = vmul.f32 %v660, %v658
        %v662 = vmul.f32 %v660, %v659
        %v663 = vadd.f32 %v631, %v661
        %v664 = vadd.f32 %v632, %v662
        %s665 = sld [smem:[#allocation3 + $0x2f]]
        %v666 = vld [vmem:[%s263 + $0x6] sm:$0xff]
        %v667 = vld [vmem:[%s263 + $0xe] sm:$0xff]
        %v668 = vstv %s665
        %v669 = vmul.f32 %v668, %v666
        %v670 = vmul.f32 %v668, %v667
        %v671 = vadd.f32 %v639, %v669
        %v672 = vadd.f32 %v640, %v670
        %s673 = sld [smem:[#allocation3 + $0x30]]
        %v674 = vld [vmem:[%s276 + $0x6] sm:$0xff]
        %v675 = vld [vmem:[%s276 + $0xe] sm:$0xff]
        %v676 = vstv %s673
        %v677 = vmul.f32 %v676, %v674
        %v678 = vmul.f32 %v676, %v675
        %v679 = vadd.f32 %v647, %v677
        %v680 = vadd.f32 %v648, %v678
        %v681 = vadd.f32 %v679, %v655
        %v682 = vadd.f32 %v680, %v656
        %v683 = vadd.f32 %v663, %v671
        %v684 = vadd.f32 %v664, %v672
        %v685 = vadd.f32 %v681, %v683
        %v686 = vadd.f32 %v682, %v684
        %v687 = vxor.u32 %v685, 2147483648
        %v688 = vxor.u32 %v686, 2147483648
        %v689 = vmul.f32 %v687, 1.442695
        %v690 = vpow.pop %v689
        %v691 = vmul.f32 %v688, 1.442695
        %v692 = vpow.pop %v691
        %v693 = vadd.f32 %v690, 1.0
        %v694 = vadd.f32 %v692, 1.0
        %v695 = vrcp.pop %v693
        %v696 = vmul.f32 1.0, %v695
        %v697 = vrcp.pop %v694
        %v698 = vmul.f32 1.0, %v697
        %v699 = vld [vmem:[%s152] sm:$0xff]
        %v700 = vld [vmem:[%s152 + $0x8] sm:$0xff]
        %v701 = vmul.f32 %v696, %v699
        %v702 = vmul.f32 %v698, %v700
        %703 = vst.msk [vmem:[%s173] sm:$0xff] %vm247, %v701
        %704 = vst.msk [vmem:[%s173 + $0x8] sm:$0xff] %vm247, %v702
        %v705 = vld [vmem:[%s176] sm:$0xff]
        %v706 = vld [vmem:[%s176 + $0x8] sm:$0xff]
        %v707 = vmul.f32 %v696, %v705
        %v708 = vmul.f32 %v698, %v706
        %s709 = scalar_lea.vmem %s173, 16 [#allocation8]
        %710 = vst.msk [vmem:[%s709] sm:$0xff] %vm247, %v707
        %711 = vst.msk [vmem:[%s709 + $0x8] sm:$0xff] %vm247, %v708
        %v712 = vld [vmem:[%s181] sm:$0xff]
        %v713 = vld [vmem:[%s181 + $0x8] sm:$0xff]
        %v714 = vmul.f32 %v696, %v712
        %v715 = vmul.f32 %v698, %v713
        %s716 = scalar_lea.vmem %s173, 32 [#allocation8]
        %717 = vst.msk [vmem:[%s716] sm:$0xff] %vm247, %v714
        %718 = vst.msk [vmem:[%s716 + $0x8] sm:$0xff] %vm247, %v715
        %v719 = vld [vmem:[%s186] sm:$0xff]
        %v720 = vld [vmem:[%s186 + $0x8] sm:$0xff]
        %v721 = vmul.f32 %v696, %v719
        %v722 = vmul.f32 %v698, %v720
        %s723 = scalar_lea.vmem %s173, 48 [#allocation8]
        %724 = vst.msk [vmem:[%s723] sm:$0xff] %vm247, %v721
        %725 = vst.msk [vmem:[%s723 + $0x8] sm:$0xff] %vm247, %v722
        %s726 = sand.u32 %s75, 1
        %s727 = scalar_lea.sflag [#allocation5], %s726
        %s728 = sand.u32 %s75, 1
        %s729 = smul.addr %s728, 64
        %s730 = scalar_lea.vmem [#allocation8], %s729
        // Predicated region
        $region37: #{tpu_custom_call.1} parent=27 // pred_check
          %p731 = pneg %p85
        $region38: #{tpu_custom_call.1} parent=27 // pred_check_branch
          %733 = sbr.rel (%p731) target = $region40
        $region39: #{tpu_custom_call.1} parent=27 // pred_region
          %s735 = ssub.s32 1024, 1024
          %736 = vsyncadd %s727, %s735
          %s737 = smul.addr %s20, 8
          %s738 = smul.addr %s737, 128
          %s739 = scalar_lea.hbm %s2, %s738
          %s740 = sshll.u32 %s730, 4
          %s741 = int_to_ptr.vmem [resolvable:$true] %s740
          %746 = dma.vmem_to_hbm [thread:$0]  %s741, 1024, %s739, %s727, 128, 128, 8
        $region40: #{tpu_custom_call.1} parent=27 // pred_fallthru
          _
      $region28: #{tpu_custom_call.1} parent=5 // pred_fallthru
        _
      %p747 = scmp.le.s32.totalorder 2, %s15
      // Predicated region
      $region41: #{tpu_custom_call.1} parent=5 // pred_check
        %p748 = pneg %p747
      $region42: #{tpu_custom_call.1} parent=5 // pred_check_branch
        %750 = sbr.rel (%p748) target = $region44
      $region43: #{tpu_custom_call.1} parent=5 // pred_region
        %s751 = ssub.s32 %s15, 2
        // Predicated region
        $region45: #{tpu_custom_call.1} parent=43 // pred_check
          %p752 = pneg %p91
        $region46: #{tpu_custom_call.1} parent=43 // pred_check_branch
          %754 = sbr.rel (%p752) target = $region48
        $region47: #{tpu_custom_call.1} parent=43 // pred_region
          %s755 = sand.u32 %s76, 1
          %s756 = scalar_lea.sflag [#allocation5], %s755
          %s757 = sand.u32 %s76, 1
          %s758 = smul.addr %s757, 64
          %s759 = scalar_lea.vmem [#allocation8], %s758
          %760 = dma.done %s756, 1024
        $region48: #{tpu_custom_call.1} parent=43 // pred_fallthru
          _
      $region44: #{tpu_custom_call.1} parent=5 // pred_fallthru
        _
    $region6: #{tpu_custom_call.1} parent=1 // loop_footer
      %s19 = sadd.s32 1, %s15
    $region7: #{tpu_custom_call.1} parent=1 // loop_footer_branch
      %14 = sbr.rel target = $region3
    $region8: #{tpu_custom_call.1} parent=1 // loop_exit
      _
    %761 = vsyncpa [#allocation4], 1
    %s762 = scalar_lea.sflag [#allocation4], 1
    %763 = vsyncpa %s762, 1
    %764 = vsyncpa [#allocation5], 1
    %s765 = scalar_lea.sflag [#allocation5], 1
    %766 = vsyncpa %s765, 1
    %767 = vsyncpa [#allocation6], 1
    %s768 = scalar_lea.sflag [#allocation6], 1
    %769 = vsyncpa %s768, 1

</llo_original>
